<compile_context>
chip_gen: v5e
topology: v5e:2x2
jax: 0.10.0
libtpu: 0.0.40
codegen_flags: <defaults>
</compile_context>

<pallas_src>
import functools

import numpy as np
import jax
import jax.numpy as jnp
from jax.experimental import pallas as pl
from jax.experimental.pallas import tpu as pltpu


def _rup(v, m):
    return (v + m - 1) // m * m


# ----------------------------------------------------------------------------
# Pallas kernel
# ----------------------------------------------------------------------------
def _make_fused_conv_kernel(K, stride, Cin, Cout, TOH, OW, use_subgemm):
    TM = TOH * OW
    Kdim = K * K * Cin

    def kernel(y_ref, x_ref, w_ref, b_ref, o_ref, wcomb_ref):
        # y_ref:     [B, 4]            f32, SMEM   (per-batch attention weights, scalar reads)
        # x_ref:     [Hp, Wp, Cin]     bf16, VMEM  (whole padded NHWC image; DMA'd once per b)
        # w_ref:     [5, Kdim, Cout]   bf16, VMEM  (main conv + 4 templates, unpadded Cout)
        # b_ref:     [5, Cout]         f32,  VMEM
        # o_ref:     [TOH, OW, Cout]   f32,  VMEM  (unpadded NHWC output tile)
        # wcomb_ref: [Kdim, Cout]      bf16, VMEM scratch (per-batch combined weight)
        b = pl.program_id(0)
        t = pl.program_id(1)
        y0 = y_ref[b, 0]
        y1 = y_ref[b, 1]
        y2 = y_ref[b, 2]
        y3 = y_ref[b, 3]

        # Per-image weight combine (f32 combine, bf16 re-round), once per batch element.
        @pl.when(t == 0)
        def _():
            w_comb = (w_ref[0].astype(jnp.float32)
                      + y0 * w_ref[1].astype(jnp.float32)
                      + y1 * w_ref[2].astype(jnp.float32)
                      + y2 * w_ref[3].astype(jnp.float32)
                      + y3 * w_ref[4].astype(jnp.float32))
            wcomb_ref[...] = w_comb.astype(jnp.bfloat16)

        r0 = t * (TOH * stride)
        if (TOH * stride) % 8 == 0:
            r0 = pl.multiple_of(r0, 8)

        def slab(kh, kw):
            if stride == 1:
                s = x_ref[pl.ds(r0 + kh, TOH), pl.ds(kw, OW), :]
            else:
                # TODO(synk): stride > 1 (dual-axis strided pl.ds) path is not exercised here.
                s = x_ref[pl.ds(r0 + kh, TOH, stride), pl.ds(kw, OW, stride), :]
            return s.reshape(TM, Cin)

        if use_subgemm:
            # Large-Cin path: K*K accumulating sub-GEMMs, no [TM, K*K*Cin] patches buffer.
            acc = jnp.zeros((TM, Cout), jnp.float32)
            for kh in range(K):
                for kw in range(K):
                    w_slice = wcomb_ref[pl.ds((kh * K + kw) * Cin, Cin), :]
                    acc = acc + jnp.dot(slab(kh, kw), w_slice,
                                        preferred_element_type=jnp.float32)
        else:
            # Small-Cin path: in-VMEM im2col + a single GEMM (keeps the contraction deep).
            patches = jnp.concatenate(
                [slab(kh, kw) for kh in range(K) for kw in range(K)], axis=-1)   # [TM, Kdim]
            acc = jnp.dot(patches, wcomb_ref[...], preferred_element_type=jnp.float32)

        # Combined bias (4 scalar-vector FMAs on [1, Cout] -- negligible).
        bias = b_ref[...]                                                        # [5, Cout]
        b_comb = (bias[0:1, :] + y0 * bias[1:2, :] + y1 * bias[2:3, :]
                  + y2 * bias[3:4, :] + y3 * bias[4:5, :])                       # [1, Cout]
        out = acc + b_comb                                                       # [TM, Cout]
        o_ref[...] = out.reshape(TOH, OW, Cout).astype(o_ref.dtype)

    return kernel


# ----------------------------------------------------------------------------
# Parameter setup (deterministic, in-script)
# ----------------------------------------------------------------------------
def init_params(key, Cin, Cout, K, squeeze):
    ks = jax.random.split(key, 14)
    g = min(Cin, Cout)
    s = 0.1
    return {
        "conv_w": jax.random.normal(ks[0], (Cout, Cin, K, K), jnp.float32) * s,
        "conv_b": jax.random.normal(ks[1], (Cout,), jnp.float32) * s,
        "nn_w":   jax.random.normal(ks[2], (Cout, Cin // g, K, K), jnp.float32) * s,
        "nn_b":   jax.random.normal(ks[3], (Cout,), jnp.float32) * s,
        "c11_w":  jax.random.normal(ks[4], (Cout, Cin, 1, 1), jnp.float32) * s,
        "c11_b":  jax.random.normal(ks[5], (Cout,), jnp.float32) * s,
        "n1_w":   jax.random.normal(ks[6], (Cout, Cin, K, 1), jnp.float32) * s,
        "n1_b":   jax.random.normal(ks[7], (Cout,), jnp.float32) * s,
        "c1n_w":  jax.random.normal(ks[8], (Cout, Cin, 1, K), jnp.float32) * s,
        "c1n_b":  jax.random.normal(ks[9], (Cout,), jnp.float32) * s,
        "att_w1": jax.random.normal(ks[10], (squeeze, Cin), jnp.float32) * 0.3,  # Linear [out,in]
        "att_b1": jax.random.normal(ks[11], (1, squeeze), jnp.float32) * 0.1,
        "att_w2": jax.random.normal(ks[12], (4, squeeze), jnp.float32) * 0.3,    # Linear [out,in]
        "att_b2": jax.random.normal(ks[13], (1, 4), jnp.float32) * 0.1,
    }


def build_weight_stack(p, Cin, Cout, K, pad):
    """Stack the 5 conv weights as bf16 [5, K*K*Cin, Cout] (no Cout padding).

    Row ordering matches the in-kernel patch lane order: (kh, kw, cin).
    """
    g = min(Cin, Cout)
    cin_g, cout_g = Cin // g, Cout // g

    def to_mat(w_oihw):   # [Cout, Cin, K, K] -> [K*K*Cin, Cout]
        return w_oihw.transpose(2, 3, 1, 0).reshape(K * K * Cin, Cout)

    # grouped conv_nn -> dense weight via a mask (no per-channel python scatter loop)
    co = jnp.arange(Cout)
    ci = jnp.arange(Cin)
    mask = (co[:, None] // cout_g) == (ci[None, :] // cin_g)                     # [Cout, Cin]
    wnn = jnp.where(mask[:, :, None, None], p["nn_w"][:, ci % cin_g, :, :], 0.0)

    # 1x1 / Kx1 / 1xK templates embedded at the kernel center (same output grid as main conv)
    w11 = jnp.zeros((Cout, Cin, K, K), jnp.float32).at[:, :, pad, pad].set(p["c11_w"][:, :, 0, 0])
    wn1 = jnp.zeros((Cout, Cin, K, K), jnp.float32).at[:, :, :, pad].set(p["n1_w"][:, :, :, 0])
    w1n = jnp.zeros((Cout, Cin, K, K), jnp.float32).at[:, :, pad, :].set(p["c1n_w"][:, :, 0, :])

    W_stack = jnp.stack([to_mat(w) for w in (p["conv_w"], wnn, w11, wn1, w1n)],
                        axis=0).astype(jnp.bfloat16)                             # [5, Kdim, Cout]
    B_stack = jnp.stack([p["conv_b"], p["nn_b"], p["c11_b"], p["n1_b"], p["c1n_b"]],
                        axis=0).astype(jnp.float32)                              # [5, Cout]
    return W_stack, B_stack


# ----------------------------------------------------------------------------
# Attention (GAP -> FC -> ReLU -> FC -> Sigmoid) -- tiny MLP, plain JAX per perf review.
# ----------------------------------------------------------------------------
def _attention(ax, params):
    pooled = jnp.mean(ax, axis=(2, 3))                                           # [B, Cin]
    h = jnp.maximum(pooled @ params["att_w1"].T + params["att_b1"], 0.0)
    return jax.nn.sigmoid(h @ params["att_w2"].T + params["att_b2"])             # [B, 4]


def _vmem_limit_bytes(estimate):
    try:
        phys = int(pltpu.get_tpu_info().vmem_capacity_bytes)
    except Exception:
        phys = 64 * 2**20      # conservative fallback = v7x per-TensorCore VMEM
    cap = max(16 * 2**20, phys - 8 * 2**20)          # leave compiler headroom
    return int(min(cap, max(32 * 2**20, 2 * estimate)))


# ----------------------------------------------------------------------------
# Forward pass (Pallas)
# ----------------------------------------------------------------------------
def conv2d_dynamic_forward(x, params, *, K, stride, pad, Cout, attention_x=None):
    if K % 2 == 0 or pad != K // 2:
        raise ValueError("`padding` must equal `kernel_size // 2` and kernel_size must be odd.")
    x = x.astype(jnp.float32)
    B, Cin, H, W = x.shape

    ax = x if attention_x is None else attention_x.astype(jnp.float32)
    y = _attention(ax, params)                                                   # [B, 4] f32

    OH = (H + 2 * pad - K) // stride + 1
    OW = (W + 2 * pad - K) // stride + 1
    Kdim = K * K * Cin

    W_stack, B_stack = build_weight_stack(params, Cin, Cout, K, pad)

    # ~1024 output pixels per grid step (amortize per-step and per-matmul overhead).
    TOH = max(1, min(OH, -(-1024 // OW)))
    T = -(-OH // TOH)
    TM = TOH * OW

    # NCHW -> NHWC, spatial zero-pad (+ extra rows so every row tile is in bounds), bf16.
    # TODO(synk): for realistic image sizes on v7x the whole padded image per batch element
    # should be row-band double-buffered (memory_space=pl.ANY + make_async_copy) instead of
    # kept resident; at demo scale the image block is a few KiB so residency is the right call.
    # TODO(synk): for small Cin a packed (W*Cin) lane layout would cut the ~128/Cin VMEM
    # inflation of the resident image block.
    Hp = max(H + 2 * pad, (T * TOH - 1) * stride + K)
    Wp = W + 2 * pad
    x_nhwc = jnp.pad(x.transpose(0, 2, 3, 1),
                     ((0, 0), (pad, Hp - H - pad), (pad, pad), (0, 0))).astype(jnp.bfloat16)

    use_subgemm = Cin >= 128
    kernel = _make_fused_conv_kernel(K, stride, Cin, Cout, TOH, OW, use_subgemm)

    # VMEM budget estimate with (8,128) padding of the trailing dims (+2x headroom).
    lane = lambda n: _rup(max(int(n), 1), 128)
    sub = lambda n: _rup(max(int(n), 1), 8)
    img_blk = Hp * sub(Wp) * lane(Cin) * 2
    w_blk = 5 * sub(Kdim) * lane(Cout) * 2
    b_blk = sub(5) * lane(Cout) * 4
    out_blk = TOH * sub(OW) * lane(Cout) * 4
    wcomb_blk = sub(Kdim) * lane(Cout) * 2
    interm = sub(TM) * lane(Kdim) * 2 + sub(TM) * lane(Cout) * 4 + 5 * sub(Kdim) * lane(Cout) * 4
    vmem_est = 2 * (img_blk + w_blk + b_blk + out_blk) + wcomb_blk + interm
    vmem_limit = _vmem_limit_bytes(vmem_est)

    # TODO(synk): the grid-invariant weight/bias blocks could be single-buffered
    # (pipeline_mode=pl.Buffered(1)) to halve their VMEM; left at default for portability.
    out_nhwc = pl.pallas_call(
        kernel,
        out_shape=jax.ShapeDtypeStruct((B, T * TOH, OW, Cout), jnp.float32),
        grid=(B, T),
        in_specs=[
            pl.BlockSpec(memory_space=pltpu.MemorySpace.SMEM),                   # y [B,4] scalars
            pl.BlockSpec((None, Hp, Wp, Cin), lambda b, t: (b, 0, 0, 0)),        # 1 DMA per image
            pl.BlockSpec((5, Kdim, Cout), lambda b, t: (0, 0, 0)),               # weight stack
            pl.BlockSpec((5, Cout), lambda b, t: (0, 0)),                        # bias stack
        ],
        out_specs=pl.BlockSpec((None, TOH, OW, Cout), lambda b, t: (b, t, 0, 0)),
        scratch_shapes=[pltpu.VMEM((Kdim, Cout), jnp.bfloat16)],                 # combined weight
        compiler_params=pltpu.CompilerParams(
            # Row-tile axis is sequential (combined-weight scratch built at t == 0); batch is
            # the megacore axis on v7x.
            dimension_semantics=("parallel", "arbitrary"),
            vmem_limit_bytes=vmem_limit,
        ),
    )(y, x_nhwc, W_stack, B_stack)

    # Trim the row overhang and go back to PyTorch's NCHW layout.
    # TODO(synk): returning NHWC would save a full-tensor transpose pass if the downstream
    # consumer accepts channels-last.
    out = out_nhwc[:, :OH].transpose(0, 3, 1, 2)
    return out, y


# ----------------------------------------------------------------------------
# Pure-JAX reference (correctness check; conv operands rounded to bf16 to match the
# kernel's bf16-operand / f32-accumulate MXU path)
# ----------------------------------------------------------------------------
def reference_forward(x, params, *, K, stride, pad, Cout):
    x = x.astype(jnp.float32)
    B, Cin, H, W = x.shape
    g = min(Cin, Cout)
    rnd = lambda a: a.astype(jnp.bfloat16).astype(jnp.float32)
    xc = rnd(x)

    def conv(w, b, padding, groups=1):
        o = jax.lax.conv_general_dilated(
            xc, rnd(w), (stride, stride), padding,
            dimension_numbers=("NCHW", "OIHW", "NCHW"),
            feature_group_count=groups,
            precision=jax.lax.Precision.HIGHEST)
        return o + b[None, :, None, None]

    y = _attention(x, params)

    out = conv(params["conv_w"], params["conv_b"], ((pad, pad), (pad, pad)))
    temps = [
        conv(params["nn_w"], params["nn_b"], ((pad, pad), (pad, pad)), groups=g),
        conv(params["c11_w"], params["c11_b"], ((0, 0), (0, 0))),
        conv(params["n1_w"], params["n1_b"], ((pad, pad), (0, 0))),
        conv(params["c1n_w"], params["c1n_b"], ((0, 0), (pad, pad))),
    ]
    for i, t in enumerate(temps):
        out = out + t * y[:, i].reshape(-1, 1, 1, 1)
    return out, y


if __name__ == "__main__":
    B, Cin, Cout, H, Wd = 2, 4, 8, 16, 16
    K, stride, pad, squeeze = 3, 1, 1, 2

    key = jax.random.PRNGKey(0)
    kx, kp = jax.random.split(key)
    x = jax.random.normal(kx, (B, Cin, H, Wd), jnp.float32)
    params = init_params(kp, Cin, Cout, K, squeeze)

    fwd = jax.jit(functools.partial(conv2d_dynamic_forward,
                                    K=K, stride=stride, pad=pad, Cout=Cout))
    out, y = fwd(x, params)
    out = jax.block_until_ready(out)
    y = jax.block_until_ready(y)

    ref_out, ref_y = reference_forward(x, params, K=K, stride=stride, pad=pad, Cout=Cout)
    np.testing.assert_allclose(np.asarray(y), np.asarray(ref_y), rtol=5e-3, atol=5e-3)
    np.testing.assert_allclose(np.asarray(out), np.asarray(ref_out), rtol=2e-2, atol=2e-2)
    print("KERNEL_OK")
</pallas_src>

<mosaic_0001>
module attributes {stable_mosaic.version = 11 : i64} {
  func.func @kernel(%arg0: i32, %arg1: i32, %arg2: memref<2x4xf32, #tpu.memory_space<smem>>, %arg3: memref<1x18x18x4xbf16, #tpu.memory_space<vmem>>, %arg4: memref<5x36x8xbf16, #tpu.memory_space<vmem>>, %arg5: memref<5x8xf32, #tpu.memory_space<vmem>>, %arg6: memref<1x16x16x8xf32, #tpu.memory_space<vmem>>, %arg7: memref<36x8xbf16, #tpu.memory_space<vmem>>) attributes {dimension_semantics = [#tpu.dimension_semantics<parallel>, #tpu.dimension_semantics<arbitrary>], iteration_bounds = array<i64: 2, 1>, scalar_prefetch = 0 : i64, scratch_operands = 1 : i64, tpu.core_type = #tpu.core_type<tc>, window_params = [{transform_indices = @transform_0, window_bounds = array<i64: 2, 4>}, {transform_indices = @transform_1, window_bounds = array<i64: 1, 18, 18, 4>}, {pipeline_mode = #tpu.pipeline_mode<synchronous>, transform_indices = @transform_2, window_bounds = array<i64: 5, 36, 8>}, {pipeline_mode = #tpu.pipeline_mode<synchronous>, transform_indices = @transform_3, window_bounds = array<i64: 5, 8>}, {transform_indices = @transform_4, window_bounds = array<i64: 1, 16, 16, 8>}]} {
    %0 = arith.index_cast %arg0 : i32 to index
    %c0 = arith.constant 0 : index
    %1 = memref.load %arg2[%0, %c0] : memref<2x4xf32, #tpu.memory_space<smem>>
    %2 = arith.index_cast %arg0 : i32 to index
    %c1 = arith.constant 1 : index
    %3 = memref.load %arg2[%2, %c1] : memref<2x4xf32, #tpu.memory_space<smem>>
    %4 = arith.index_cast %arg0 : i32 to index
    %c2 = arith.constant 2 : index
    %5 = memref.load %arg2[%4, %c2] : memref<2x4xf32, #tpu.memory_space<smem>>
    %6 = arith.index_cast %arg0 : i32 to index
    %c3 = arith.constant 3 : index
    %7 = memref.load %arg2[%6, %c3] : memref<2x4xf32, #tpu.memory_space<smem>>
    %c0_i32 = arith.constant 0 : i32
    %8 = arith.cmpi eq, %arg1, %c0_i32 : i32
    %9 = arith.extui %8 : i1 to i32
    %c0_i32_0 = arith.constant 0 : i32
    %10 = arith.cmpi ne, %9, %c0_i32_0 : i32
    scf.if %10 {
      %c0_43 = arith.constant 0 : index
      %c0_44 = arith.constant 0 : index
      %c0_45 = arith.constant 0 : index
      %85 = vector.load %arg4[%c0_43, %c0_44, %c0_45] : memref<5x36x8xbf16, #tpu.memory_space<vmem>>, vector<1x36x8xbf16>
      %86 = vector.shape_cast %85 : vector<1x36x8xbf16> to vector<36x8xbf16>
      %87 = arith.extf %86 : vector<36x8xbf16> to vector<36x8xf32>
      %c1_46 = arith.constant 1 : index
      %c0_47 = arith.constant 0 : index
      %c0_48 = arith.constant 0 : index
      %88 = vector.load %arg4[%c1_46, %c0_47, %c0_48] : memref<5x36x8xbf16, #tpu.memory_space<vmem>>, vector<1x36x8xbf16>
      %89 = vector.shape_cast %88 : vector<1x36x8xbf16> to vector<36x8xbf16>
      %90 = arith.extf %89 : vector<36x8xbf16> to vector<36x8xf32>
      %91 = vector.broadcast %1 : f32 to vector<36x8xf32>
      %92 = arith.mulf %91, %90 : vector<36x8xf32>
      %93 = arith.addf %87, %92 : vector<36x8xf32>
      %c2_49 = arith.constant 2 : index
      %c0_50 = arith.constant 0 : index
      %c0_51 = arith.constant 0 : index
      %94 = vector.load %arg4[%c2_49, %c0_50, %c0_51] : memref<5x36x8xbf16, #tpu.memory_space<vmem>>, vector<1x36x8xbf16>
      %95 = vector.shape_cast %94 : vector<1x36x8xbf16> to vector<36x8xbf16>
      %96 = arith.extf %95 : vector<36x8xbf16> to vector<36x8xf32>
      %97 = vector.broadcast %3 : f32 to vector<36x8xf32>
      %98 = arith.mulf %97, %96 : vector<36x8xf32>
      %99 = arith.addf %93, %98 : vector<36x8xf32>
      %c3_52 = arith.constant 3 : index
      %c0_53 = arith.constant 0 : index
      %c0_54 = arith.constant 0 : index
      %100 = vector.load %arg4[%c3_52, %c0_53, %c0_54] : memref<5x36x8xbf16, #tpu.memory_space<vmem>>, vector<1x36x8xbf16>
      %101 = vector.shape_cast %100 : vector<1x36x8xbf16> to vector<36x8xbf16>
      %102 = arith.extf %101 : vector<36x8xbf16> to vector<36x8xf32>
      %103 = vector.broadcast %5 : f32 to vector<36x8xf32>
      %104 = arith.mulf %103, %102 : vector<36x8xf32>
      %105 = arith.addf %99, %104 : vector<36x8xf32>
      %c4 = arith.constant 4 : index
      %c0_55 = arith.constant 0 : index
      %c0_56 = arith.constant 0 : index
      %106 = vector.load %arg4[%c4, %c0_55, %c0_56] : memref<5x36x8xbf16, #tpu.memory_space<vmem>>, vector<1x36x8xbf16>
      %107 = vector.shape_cast %106 : vector<1x36x8xbf16> to vector<36x8xbf16>
      %108 = arith.extf %107 : vector<36x8xbf16> to vector<36x8xf32>
      %109 = vector.broadcast %7 : f32 to vector<36x8xf32>
      %110 = arith.mulf %109, %108 : vector<36x8xf32>
      %111 = arith.addf %105, %110 : vector<36x8xf32>
      %112 = arith.truncf %111 : vector<36x8xf32> to vector<36x8xbf16>
      %c0_57 = arith.constant 0 : index
      %c0_58 = arith.constant 0 : index
      %113 = vector.load %arg7[%c0_57, %c0_58] : memref<36x8xbf16, #tpu.memory_space<vmem>>, vector<36x8xbf16>
      tpu.vector_store %arg7[%c0_57, %c0_58], %112 {strides = array<i32>} : memref<36x8xbf16, #tpu.memory_space<vmem>>, vector<36x8xbf16>,
    } else {
    }
    %c16_i32 = arith.constant 16 : i32
    %11 = arith.muli %arg1, %c16_i32 : i32
    %12 = tpu.assume_multiple %11, 8 : i32
    %c0_i32_1 = arith.constant 0 : i32
    %13 = arith.addi %12, %c0_i32_1 : i32
    %c0_2 = arith.constant 0 : index
    %14 = arith.index_cast %13 : i32 to index
    %c0_3 = arith.constant 0 : index
    %c0_4 = arith.constant 0 : index
    %15 = vector.load %arg3[%c0_2, %14, %c0_3, %c0_4] : memref<1x18x18x4xbf16, #tpu.memory_space<vmem>>, vector<1x16x16x4xbf16>
    %16 = vector.shape_cast %15 : vector<1x16x16x4xbf16> to vector<16x16x4xbf16>
    %17 = vector.shape_cast %16 : vector<16x16x4xbf16> to vector<256x4xbf16>
    %c0_i32_5 = arith.constant 0 : i32
    %18 = arith.addi %12, %c0_i32_5 : i32
    %c0_6 = arith.constant 0 : index
    %19 = arith.index_cast %18 : i32 to index
    %c1_7 = arith.constant 1 : index
    %c0_8 = arith.constant 0 : index
    %20 = vector.load %arg3[%c0_6, %19, %c1_7, %c0_8] : memref<1x18x18x4xbf16, #tpu.memory_space<vmem>>, vector<1x16x16x4xbf16>
    %21 = vector.shape_cast %20 : vector<1x16x16x4xbf16> to vector<16x16x4xbf16>
    %22 = vector.shape_cast %21 : vector<16x16x4xbf16> to vector<256x4xbf16>
    %c0_i32_9 = arith.constant 0 : i32
    %23 = arith.addi %12, %c0_i32_9 : i32
    %c0_10 = arith.constant 0 : index
    %24 = arith.index_cast %23 : i32 to index
    %c2_11 = arith.constant 2 : index
    %c0_12 = arith.constant 0 : index
    %25 = vector.load %arg3[%c0_10, %24, %c2_11, %c0_12] : memref<1x18x18x4xbf16, #tpu.memory_space<vmem>>, vector<1x16x16x4xbf16>
    %26 = vector.shape_cast %25 : vector<1x16x16x4xbf16> to vector<16x16x4xbf16>
    %27 = vector.shape_cast %26 : vector<16x16x4xbf16> to vector<256x4xbf16>
    %c1_i32 = arith.constant 1 : i32
    %28 = arith.addi %12, %c1_i32 : i32
    %c0_13 = arith.constant 0 : index
    %29 = arith.index_cast %28 : i32 to index
    %c0_14 = arith.constant 0 : index
    %c0_15 = arith.constant 0 : index
    %30 = vector.load %arg3[%c0_13, %29, %c0_14, %c0_15] : memref<1x18x18x4xbf16, #tpu.memory_space<vmem>>, vector<1x16x16x4xbf16>
    %31 = vector.shape_cast %30 : vector<1x16x16x4xbf16> to vector<16x16x4xbf16>
    %32 = vector.shape_cast %31 : vector<16x16x4xbf16> to vector<256x4xbf16>
    %c1_i32_16 = arith.constant 1 : i32
    %33 = arith.addi %12, %c1_i32_16 : i32
    %c0_17 = arith.constant 0 : index
    %34 = arith.index_cast %33 : i32 to index
    %c1_18 = arith.constant 1 : index
    %c0_19 = arith.constant 0 : index
    %35 = vector.load %arg3[%c0_17, %34, %c1_18, %c0_19] : memref<1x18x18x4xbf16, #tpu.memory_space<vmem>>, vector<1x16x16x4xbf16>
    %36 = vector.shape_cast %35 : vector<1x16x16x4xbf16> to vector<16x16x4xbf16>
    %37 = vector.shape_cast %36 : vector<16x16x4xbf16> to vector<256x4xbf16>
    %c1_i32_20 = arith.constant 1 : i32
    %38 = arith.addi %12, %c1_i32_20 : i32
    %c0_21 = arith.constant 0 : index
    %39 = arith.index_cast %38 : i32 to index
    %c2_22 = arith.constant 2 : index
    %c0_23 = arith.constant 0 : index
    %40 = vector.load %arg3[%c0_21, %39, %c2_22, %c0_23] : memref<1x18x18x4xbf16, #tpu.memory_space<vmem>>, vector<1x16x16x4xbf16>
    %41 = vector.shape_cast %40 : vector<1x16x16x4xbf16> to vector<16x16x4xbf16>
    %42 = vector.shape_cast %41 : vector<16x16x4xbf16> to vector<256x4xbf16>
    %c2_i32 = arith.constant 2 : i32
    %43 = arith.addi %12, %c2_i32 : i32
    %c0_24 = arith.constant 0 : index
    %44 = arith.index_cast %43 : i32 to index
    %c0_25 = arith.constant 0 : index
    %c0_26 = arith.constant 0 : index
    %45 = vector.load %arg3[%c0_24, %44, %c0_25, %c0_26] : memref<1x18x18x4xbf16, #tpu.memory_space<vmem>>, vector<1x16x16x4xbf16>
    %46 = vector.shape_cast %45 : vector<1x16x16x4xbf16> to vector<16x16x4xbf16>
    %47 = vector.shape_cast %46 : vector<16x16x4xbf16> to vector<256x4xbf16>
    %c2_i32_27 = arith.constant 2 : i32
    %48 = arith.addi %12, %c2_i32_27 : i32
    %c0_28 = arith.constant 0 : index
    %49 = arith.index_cast %48 : i32 to index
    %c1_29 = arith.constant 1 : index
    %c0_30 = arith.constant 0 : index
    %50 = vector.load %arg3[%c0_28, %49, %c1_29, %c0_30] : memref<1x18x18x4xbf16, #tpu.memory_space<vmem>>, vector<1x16x16x4xbf16>
    %51 = vector.shape_cast %50 : vector<1x16x16x4xbf16> to vector<16x16x4xbf16>
    %52 = vector.shape_cast %51 : vector<16x16x4xbf16> to vector<256x4xbf16>
    %c2_i32_31 = arith.constant 2 : i32
    %53 = arith.addi %12, %c2_i32_31 : i32
    %c0_32 = arith.constant 0 : index
    %54 = arith.index_cast %53 : i32 to index
    %c2_33 = arith.constant 2 : index
    %c0_34 = arith.constant 0 : index
    %55 = vector.load %arg3[%c0_32, %54, %c2_33, %c0_34] : memref<1x18x18x4xbf16, #tpu.memory_space<vmem>>, vector<1x16x16x4xbf16>
    %56 = vector.shape_cast %55 : vector<1x16x16x4xbf16> to vector<16x16x4xbf16>
    %57 = vector.shape_cast %56 : vector<16x16x4xbf16> to vector<256x4xbf16>
    %58 = tpu.concatenate %17, %22, %27, %32, %37, %42, %47, %52, %57 in 1 : vector<256x4xbf16>, vector<256x4xbf16>, vector<256x4xbf16>, vector<256x4xbf16>, vector<256x4xbf16>, vector<256x4xbf16>, vector<256x4xbf16>, vector<256x4xbf16>, vector<256x4xbf16> -> vector<256x36xbf16>
    %c0_35 = arith.constant 0 : index
    %c0_36 = arith.constant 0 : index
    %59 = vector.load %arg7[%c0_35, %c0_36] : memref<36x8xbf16, #tpu.memory_space<vmem>>, vector<36x8xbf16>
    %cst = arith.constant dense<0.000000e+00> : vector<256x8xf32>
    %60 = tpu.matmul %58, %59, %cst {dimension_numbers = #tpu.dot_dimension_numbers<[1], [0], [0], [1], [0, 0, 1, 1], [], []>} : vector<256x36xbf16>, vector<36x8xbf16>, vector<256x8xf32> -> vector<256x8xf32>
    %c0_37 = arith.constant 0 : index
    %c0_38 = arith.constant 0 : index
    %61 = vector.load %arg5[%c0_37, %c0_38] : memref<5x8xf32, #tpu.memory_space<vmem>>, vector<5x8xf32>
    %62 = vector.extract_strided_slice %61 {offsets = [0, 0], sizes = [1, 8], strides = [1, 1]} : vector<5x8xf32> to vector<1x8xf32>
    %63 = vector.extract_strided_slice %61 {offsets = [1, 0], sizes = [1, 8], strides = [1, 1]} : vector<5x8xf32> to vector<1x8xf32>
    %64 = vector.broadcast %1 : f32 to vector<1x8xf32>
    %65 = arith.mulf %64, %63 : vector<1x8xf32>
    %66 = arith.addf %62, %65 : vector<1x8xf32>
    %67 = vector.extract_strided_slice %61 {offsets = [2, 0], sizes = [1, 8], strides = [1, 1]} : vector<5x8xf32> to vector<1x8xf32>
    %68 = vector.broadcast %3 : f32 to vector<1x8xf32>
    %69 = arith.mulf %68, %67 : vector<1x8xf32>
    %70 = arith.addf %66, %69 : vector<1x8xf32>
    %71 = vector.extract_strided_slice %61 {offsets = [3, 0], sizes = [1, 8], strides = [1, 1]} : vector<5x8xf32> to vector<1x8xf32>
    %72 = vector.broadcast %5 : f32 to vector<1x8xf32>
    %73 = arith.mulf %72, %71 : vector<1x8xf32>
    %74 = arith.addf %70, %73 : vector<1x8xf32>
    %75 = vector.extract_strided_slice %61 {offsets = [4, 0], sizes = [1, 8], strides = [1, 1]} : vector<5x8xf32> to vector<1x8xf32>
    %76 = vector.broadcast %7 : f32 to vector<1x8xf32>
    %77 = arith.mulf %76, %75 : vector<1x8xf32>
    %78 = arith.addf %74, %77 : vector<1x8xf32>
    %79 = vector.broadcast %78 : vector<1x8xf32> to vector<256x8xf32>
    %80 = arith.addf %60, %79 : vector<256x8xf32>
    %81 = vector.shape_cast %80 : vector<256x8xf32> to vector<16x16x8xf32>
    %c0_39 = arith.constant 0 : index
    %c0_40 = arith.constant 0 : index
    %c0_41 = arith.constant 0 : index
    %c0_42 = arith.constant 0 : index
    %82 = vector.load %arg6[%c0_39, %c0_40, %c0_41, %c0_42] : memref<1x16x16x8xf32, #tpu.memory_space<vmem>>, vector<1x16x16x8xf32>
    %83 = vector.shape_cast %82 : vector<1x16x16x8xf32> to vector<16x16x8xf32>
    %84 = vector.shape_cast %81 : vector<16x16x8xf32> to vector<1x16x16x8xf32>
    tpu.vector_store %arg6[%c0_39, %c0_40, %c0_41, %c0_42], %84 {strides = array<i32>} : memref<1x16x16x8xf32, #tpu.memory_space<vmem>>, vector<1x16x16x8xf32>,
    return
  }
  func.func @transform_0(%arg0: i32, %arg1: i32) -> (i32, i32) {
    %c0_i32 = arith.constant 0 : i32
    %c0_i32_0 = arith.constant 0 : i32
    %c0_i32_1 = arith.constant 0 : i32
    return %c0_i32, %c0_i32_0 : i32, i32
  }
  func.func @transform_1(%arg0: i32, %arg1: i32) -> (i32, i32, i32, i32) {
    %c0_i32 = arith.constant 0 : i32
    %c0_i32_0 = arith.constant 0 : i32
    %c0_i32_1 = arith.constant 0 : i32
    %c0_i32_2 = arith.constant 0 : i32
    return %arg0, %c0_i32, %c0_i32_0, %c0_i32_1 : i32, i32, i32, i32
  }
  func.func @transform_2(%arg0: i32, %arg1: i32) -> (i32, i32, i32) {
    %c0_i32 = arith.constant 0 : i32
    %c0_i32_0 = arith.constant 0 : i32
    %c0_i32_1 = arith.constant 0 : i32
    %c0_i32_2 = arith.constant 0 : i32
    return %c0_i32, %c0_i32_0, %c0_i32_1 : i32, i32, i32
  }
  func.func @transform_3(%arg0: i32, %arg1: i32) -> (i32, i32) {
    %c0_i32 = arith.constant 0 : i32
    %c0_i32_0 = arith.constant 0 : i32
    %c0_i32_1 = arith.constant 0 : i32
    return %c0_i32, %c0_i32_0 : i32, i32
  }
  func.func @transform_4(%arg0: i32, %arg1: i32) -> (i32, i32, i32, i32) {
    %c0_i32 = arith.constant 0 : i32
    %c0_i32_0 = arith.constant 0 : i32
    %c0_i32_1 = arith.constant 0 : i32
    return %arg0, %arg1, %c0_i32, %c0_i32_0 : i32, i32, i32, i32
  }
}

</mosaic_0001>

<llo_original>
// kernel: conv2d_dynamic_forward.1
$region0: #{conv2d_dynamic_forward.1}
  #allocation0 [shape = 'u32[]', space=smem, size = 0x4, offset = 0x4, fixed_abs, tag = 'smem constant byte address 0x4 - core index']
  #allocation1 [shape = 'u32[72,128]{1,0:T(1,128)}', space=vmem, size = 0x9000, scoped, tag = 'internal scratch']
  #allocation2 [shape = 'bf16[36,8]{1,0:T(8,128)(2,1)}', space=vmem, size = 0x2800, scoped, tag = 'scratch operand']
  %s0 = inlined_call_operand.vmem [shape: f32[2,4], index: 0, kind: input, shape index: {}]
  %s1 = inlined_call_operand.vmem [shape: bf16[2,18,18,4], index: 1, kind: input, shape index: {}]
  %s2 = inlined_call_operand.vmem [shape: bf16[5,36,8], index: 2, kind: input, shape index: {}]
  %s3 = inlined_call_operand.vmem [shape: f32[5,8], index: 3, kind: input, shape index: {}]
  %s4 = inlined_call_operand.vmem [shape: f32[2,16,16,8], index: 4, kind: output, shape index: {}]
  %s5 = sld [smem:[#allocation0]]
  $region57: #{conv2d_dynamic_forward.1} parent=0
    _
  %s7 = ssub.s32 1, %s5
  %s8 = scalar_select 0, %s7, %s5
  $region1: #{conv2d_dynamic_forward.1} parent=0
    #allocation3 [shape = 'u8[1024]{0}', space=smem, size = 0x400, scoped, tag = 'input window, operand 0, single buffered']
    #allocation4 [shape = 's32[2]{0}', space=sflag, size = 0x8, scoped, tag = 'scoped memory for conv2d_dynamic_forward.1']
    %9 = vsyncpa [#allocation4], 0
    loop: start=0, step=1, limit=4
    $region2: #{conv2d_dynamic_forward.1} parent=1 // loop_pre_header
      _
    $region3: #{conv2d_dynamic_forward.1} parent=1 // loop_header
      %s11 = sphi 0, %s15
      %p12 = scmp.ge.s32.totalorder %s11, 4
      %s18 = sphi 0, %s30
      %s19 = sphi 0, %s26
      %s20 = sphi 0, %s18
      %s21 = sphi 0, %s19
      %s22 = sphi 0, %s20
      %s23 = sphi 0, %s21
      %s31 = sphi 0, %s31
      %s33 = sphi 0, %s31
      %s34 = sphi 0, %s33
      %s48 = sphi 0, %s34
      %s54 = sphi 0, %s56
      %s57 = sphi 0, %s54
      %s58 = sphi 0, %s57
      %s74 = sphi 0, %s58
      %s78 = sphi 0, %s78
      %s80 = sphi 0, %s78
      %s81 = sphi 0, %s80
      %s95 = sphi 0, %s81
      %s99 = sphi 0, %s99
      %s101 = sphi 0, %s99
      %s102 = sphi 0, %s101
      %s116 = sphi 0, %s102
      %s124 = sphi 0, %s126
      %s127 = sphi 0, %s124
      %s128 = sphi 0, %s127
      %s144 = sphi 0, %s128
    $region4: #{conv2d_dynamic_forward.1} parent=1 // loop_header_branch
      %14 = sbr.rel (%p12) target = $region8
    $region5: #{conv2d_dynamic_forward.1} parent=1 // loop_body
      %s16 = ssub.s32 %s11, 1
      %s17 = ssub.s32 %s11, 2
      %s24 = sadd.s32 1, %s19
      %p25 = scmp.ge.s32.totalorder %s24, 1
      %s26 = scalar_select %p25, 0, %s24
      %s27 = sadd.s32 1, %s18
      %s28 = scalar_select %p25, %s27, %s18
      %p29 = scmp.ge.s32.totalorder %s28, 2
      %s30 = scalar_select %p29, 0, %s28
      %s32 = sadd.s32 %s31, 1
      %p35 = scmp.eq.s32.totalorder %s11, 1
      %p36 = scmp.ne.s32.totalorder %s31, %s33
      %p37 = scmp.eq.s32.totalorder %s11, 0
      %p38 = por %p36, %p37
      %p39 = scmp.ne.s32.totalorder %s31, %s33
      %p40 = scmp.eq.s32.totalorder %s16, 1
      %p41 = por %p39, %p40
      %p42 = scmp.ne.s32.totalorder %s33, %s34
      %p43 = scmp.eq.s32.totalorder %s16, 0
      %p44 = por %p42, %p43
      %p45 = scmp.ne.s32.totalorder %s33, %s34
      %p46 = scmp.eq.s32.totalorder %s17, 1
      %p47 = por %p45, %p46
      %p49 = scmp.ne.s32.totalorder %s34, %s48
      %p50 = scmp.eq.s32.totalorder %s17, 0
      %p51 = por %p49, %p50
      %s52 = ssub.s32 %s18, %s30
      %p53 = scmp.eq.s32.totalorder %s52, 0
      %s55 = sadd.s32 %s54, 1
      %s56 = scalar_select %p53, %s54, %s55
      %p59 = pneg %p53
      %p60 = scmp.eq.s32.totalorder %s11, 1
      %p61 = por %p59, %p60
      %p62 = scmp.ne.s32.totalorder %s54, %s57
      %p63 = scmp.eq.s32.totalorder %s11, 0
      %p64 = por %p62, %p63
      %p65 = scmp.ne.s32.totalorder %s54, %s57
      %p66 = scmp.eq.s32.totalorder %s16, 1
      %p67 = por %p65, %p66
      %p68 = scmp.ne.s32.totalorder %s57, %s58
      %p69 = scmp.eq.s32.totalorder %s16, 0
      %p70 = por %p68, %p69
      %p71 = scmp.ne.s32.totalorder %s57, %s58
      %p72 = scmp.eq.s32.totalorder %s17, 1
      %p73 = por %p71, %p72
      %p75 = scmp.ne.s32.totalorder %s58, %s74
      %p76 = scmp.eq.s32.totalorder %s17, 0
      %p77 = por %p75, %p76
      %s79 = sadd.s32 %s78, 1
      %p82 = scmp.eq.s32.totalorder %s11, 1
      %p83 = scmp.ne.s32.totalorder %s78, %s80
      %p84 = scmp.eq.s32.totalorder %s11, 0
      %p85 = por %p83, %p84
      %p86 = scmp.ne.s32.totalorder %s78, %s80
      %p87 = scmp.eq.s32.totalorder %s16, 1
      %p88 = por %p86, %p87
      %p89 = scmp.ne.s32.totalorder %s80, %s81
      %p90 = scmp.eq.s32.totalorder %s16, 0
      %p91 = por %p89, %p90
      %p92 = scmp.ne.s32.totalorder %s80, %s81
      %p93 = scmp.eq.s32.totalorder %s17, 1
      %p94 = por %p92, %p93
      %p96 = scmp.ne.s32.totalorder %s81, %s95
      %p97 = scmp.eq.s32.totalorder %s17, 0
      %p98 = por %p96, %p97
      %s100 = sadd.s32 %s99, 1
      %p103 = scmp.eq.s32.totalorder %s11, 1
      %p104 = scmp.ne.s32.totalorder %s99, %s101
      %p105 = scmp.eq.s32.totalorder %s11, 0
      %p106 = por %p104, %p105
      %p107 = scmp.ne.s32.totalorder %s99, %s101
      %p108 = scmp.eq.s32.totalorder %s16, 1
      %p109 = por %p107, %p108
      %p110 = scmp.ne.s32.totalorder %s101, %s102
      %p111 = scmp.eq.s32.totalorder %s16, 0
      %p112 = por %p110, %p111
      %p113 = scmp.ne.s32.totalorder %s101, %s102
      %p114 = scmp.eq.s32.totalorder %s17, 1
      %p115 = por %p113, %p114
      %p117 = scmp.ne.s32.totalorder %s102, %s116
      %p118 = scmp.eq.s32.totalorder %s17, 0
      %p119 = por %p117, %p118
      %s120 = ssub.s32 %s18, %s30
      %s121 = ssub.s32 %s19, %s26
      %s122 = sor.u32 %s120, %s121
      %p123 = scmp.eq.s32.totalorder %s122, 0
      %s125 = sadd.s32 %s124, 1
      %s126 = scalar_select %p123, %s124, %s125
      %p129 = pneg %p123
      %p130 = scmp.eq.s32.totalorder %s11, 1
      %p131 = por %p129, %p130
      %p132 = scmp.ne.s32.totalorder %s124, %s127
      %p133 = scmp.eq.s32.totalorder %s11, 0
      %p134 = por %p132, %p133
      %p135 = scmp.ne.s32.totalorder %s124, %s127
      %p136 = scmp.eq.s32.totalorder %s16, 1
      %p137 = por %p135, %p136
      %p138 = scmp.ne.s32.totalorder %s127, %s128
      %p139 = scmp.eq.s32.totalorder %s16, 0
      %p140 = por %p138, %p139
      %p141 = scmp.ne.s32.totalorder %s127, %s128
      %p142 = scmp.eq.s32.totalorder %s17, 1
      %p143 = por %p141, %p142
      %p145 = scmp.ne.s32.totalorder %s128, %s144
      %p146 = scmp.eq.s32.totalorder %s17, 0
      %p147 = por %p145, %p146
      %p148 = scmp.le.s32.totalorder 1, %s11
      %p149 = scmp.lt.s32.totalorder %s11, 3
      %p150 = pnand %p148, %p149
      %p151 = pneg %p150
      // Predicated region
      $region9: #{conv2d_dynamic_forward.1} parent=5 // pred_check
        _
      $region10: #{conv2d_dynamic_forward.1} parent=5 // pred_check_branch
        %153 = sbr.rel (%p150) target = $region12
      $region11: #{conv2d_dynamic_forward.1} parent=5 // pred_region
        %s154 = ssub.s32 %s11, 1
        // Predicated region
        $region13: #{conv2d_dynamic_forward.1} parent=11 // pred_check
          %p155 = pneg %p44
        $region14: #{conv2d_dynamic_forward.1} parent=11 // pred_check_branch
          %157 = sbr.rel (%p155) target = $region16
        $region15: #{conv2d_dynamic_forward.1} parent=11 // pred_region
          %159 = vsyncadd [#allocation4], 0
          %s161 = sshll.u32 %s0, 4
          %s162 = int_to_ptr.vmem [resolvable:$true] %s161
          %164 = dma.vmem_to_smem %s162, 32, [#allocation3], [#allocation4]
        $region16: #{conv2d_dynamic_forward.1} parent=11 // pred_fallthru
          _
        // Predicated region
        $region17: #{conv2d_dynamic_forward.1} parent=11 // pred_check
          %p165 = pneg %p91
        $region18: #{conv2d_dynamic_forward.1} parent=11 // pred_check_branch
          %167 = sbr.rel (%p165) target = $region20
        $region19: #{conv2d_dynamic_forward.1} parent=11 // pred_region
          _
        $region20: #{conv2d_dynamic_forward.1} parent=11 // pred_fallthru
          _
        // Predicated region
        $region21: #{conv2d_dynamic_forward.1} parent=11 // pred_check
          %p168 = pneg %p112
        $region22: #{conv2d_dynamic_forward.1} parent=11 // pred_check_branch
          %170 = sbr.rel (%p168) target = $region24
        $region23: #{conv2d_dynamic_forward.1} parent=11 // pred_region
          _
        $region24: #{conv2d_dynamic_forward.1} parent=11 // pred_fallthru
          _
      $region12: #{conv2d_dynamic_forward.1} parent=5 // pred_fallthru
        _
      %p171 = scmp.lt.s32.totalorder %s11, 2
      // Predicated region
      $region25: #{conv2d_dynamic_forward.1} parent=5 // pred_check
        %p172 = pneg %p171
      $region26: #{conv2d_dynamic_forward.1} parent=5 // pred_check_branch
        %174 = sbr.rel (%p172) target = $region28
      $region27: #{conv2d_dynamic_forward.1} parent=5 // pred_region
        // Predicated region
        $region29: #{conv2d_dynamic_forward.1} parent=27 // pred_check
          %p175 = pneg %p64
        $region30: #{conv2d_dynamic_forward.1} parent=27 // pred_check_branch
          %177 = sbr.rel (%p175) target = $region32
        $region31: #{conv2d_dynamic_forward.1} parent=27 // pred_region
          %p178 = scmp.lt.s32.totalorder %s18, 1
          %s179 = scalar_select %p178, %s18, 1
          %s180 = smul.addr %s179, 54
          %s181 = smul.addr %s180, 4
          %s182 = scalar_lea.vmem %s1, %s181
        $region32: #{conv2d_dynamic_forward.1} parent=27 // pred_fallthru
          _
      $region28: #{conv2d_dynamic_forward.1} parent=5 // pred_fallthru
        _
      %p183 = scmp.le.s32.totalorder 1, %s11
      %p184 = scmp.lt.s32.totalorder %s11, 3
      %p185 = pnand %p183, %p184
      %p186 = pneg %p185
      // Predicated region
      $region33: #{conv2d_dynamic_forward.1} parent=5 // pred_check
        _
      $region34: #{conv2d_dynamic_forward.1} parent=5 // pred_check_branch
        %188 = sbr.rel (%p185) target = $region36
      $region35: #{conv2d_dynamic_forward.1} parent=5 // pred_region
        %s189 = ssub.s32 %s11, 1
        // Predicated region
        $region37: #{conv2d_dynamic_forward.1} parent=35 // pred_check
          %p190 = pneg %p44
        $region38: #{conv2d_dynamic_forward.1} parent=35 // pred_check_branch
          %192 = sbr.rel (%p190) target = $region40
        $region39: #{conv2d_dynamic_forward.1} parent=35 // pred_region
          %194 = dma.done [#allocation4], 32
        $region40: #{conv2d_dynamic_forward.1} parent=35 // pred_fallthru
          _
        %195 = sfence
        %p196 = pneg %p44
        %p197 = pneg %p41
        %p198 = scmp.lt.s32.totalorder %s20, 1
        %s199 = scalar_select %p198, %s20, 1
        %s200 = smul.addr %s199, 54
        %s201 = smul.addr %s200, 4
        %s202 = scalar_lea.vmem %s1, %s201
        %p203 = pneg %p70
        %p204 = pneg %p67
        %p205 = pneg %p91
        %p206 = pneg %p88
        %p207 = pneg %p112
        %p208 = pneg %p109
        %p209 = pneg %p140
        %p210 = pneg %p137
        %s211 = smul.u32 16, %s21
        %p212 = scmp.lt.s32.totalorder %s20, 1
        %s213 = scalar_select %p212, %s20, 1
        %p214 = scmp.lt.s32.totalorder %s211, 15
        %s215 = scalar_select %p214, %s211, 15
        %s216 = smul.addr %s215, 2
        %s217 = smul.addr %s213, 32
        %s218 = sadd.s32 %s216, %s217
        %s219 = smul.addr %s218, 8
        %s220 = scalar_lea.vmem %s4, %s219
        %p221 = scmp.lt.s32.totalorder %s20, 1
        %s222 = scalar_select %p221, %s20, 1
        %s223 = smul.addr %s222, 54
        %s224 = smul.addr %s223, 4
        %s225 = scalar_lea.vmem %s1, %s224
        %s226 = smul.u32 16, %s21
        %p227 = scmp.lt.s32.totalorder %s20, 1
        %s228 = scalar_select %p227, %s20, 1
        %p229 = scmp.lt.s32.totalorder %s226, 15
        %s230 = scalar_select %p229, %s226, 15
        %s231 = smul.addr %s230, 2
        %s232 = smul.addr %s228, 32
        %s233 = sadd.s32 %s231, %s232
        %s234 = smul.addr %s233, 8
        %s235 = scalar_lea.vmem %s4, %s234
        %s236 = smul.u32 16, %s21
        %s238 = smul.u32 %s20, 128
        %s239 = sld [smem:[#allocation3 + %s238]]
        %s240 = sadd.s32 %s238, 1
        %s241 = sld [smem:[#allocation3 + %s240]]
        %s242 = sadd.s32 %s238, 2
        %s243 = sld [smem:[#allocation3 + %s242]]
        %s244 = sadd.s32 %s238, 3
        %s245 = sld [smem:[#allocation3 + %s244]]
        %p246 = scmp.eq.s32.totalorder %s21, 0
        // Predicated region
        $region41: #{conv2d_dynamic_forward.1} parent=35 // pred_check
          %p247 = pneg %p246
        $region42: #{conv2d_dynamic_forward.1} parent=35 // pred_check_branch
          %249 = sbr.rel (%p247) target = $region44
        $region43: #{conv2d_dynamic_forward.1} parent=35 // pred_region
          %v250 = vld [vmem:[%s2] sm:$0xf]
          %v251 = vld [vmem:[%s2 + $0x4] sm:$0xf]
          %v252 = vld [vmem:[%s2 + $0x8] sm:$0xf]
          %v253 = vld [vmem:[%s2 + $0xc] sm:$0xf]
          %v254 = vld [vmem:[%s2 + $0x10] sm:$0x3]
          %v255 = vunpack.c.l.bf16 %v250
          %v256 = vunpack.c.l.bf16 %v251
          %v257 = vunpack.c.l.bf16 %v252
          %v258 = vunpack.c.l.bf16 %v253
          %v259 = vunpack.c.l.bf16 %v254
          %s260 = scalar_lea.vmem %s2, 20
          %v261 = vld [vmem:[%s260] sm:$0xf]
          %v262 = vld [vmem:[%s260 + $0x4] sm:$0xf]
          %v263 = vld [vmem:[%s260 + $0x8] sm:$0xf]
          %v264 = vld [vmem:[%s260 + $0xc] sm:$0xf]
          %v265 = vld [vmem:[%s260 + $0x10] sm:$0x3]
          %v266 = vunpack.c.l.bf16 %v261
          %v267 = vunpack.c.l.bf16 %v262
          %v268 = vunpack.c.l.bf16 %v263
          %v269 = vunpack.c.l.bf16 %v264
          %v270 = vunpack.c.l.bf16 %v265
          %v271 = vstv %s239
          %v272 = vmul.f32 %v271, %v266
          %v273 = vmul.f32 %v271, %v267
          %v274 = vmul.f32 %v271, %v268
          %v275 = vmul.f32 %v271, %v269
          %v276 = vmul.f32 %v271, %v270
          %v277 = vadd.f32 %v255, %v272
          %v278 = vadd.f32 %v256, %v273
          %v279 = vadd.f32 %v257, %v274
          %v280 = vadd.f32 %v258, %v275
          %v281 = vadd.f32 %v259, %v276
          %s282 = scalar_lea.vmem %s2, 40
          %v283 = vld [vmem:[%s282] sm:$0xf]
          %v284 = vld [vmem:[%s282 + $0x4] sm:$0xf]
          %v285 = vld [vmem:[%s282 + $0x8] sm:$0xf]
          %v286 = vld [vmem:[%s282 + $0xc] sm:$0xf]
          %v287 = vld [vmem:[%s282 + $0x10] sm:$0x3]
          %v288 = vunpack.c.l.bf16 %v283
          %v289 = vunpack.c.l.bf16 %v284
          %v290 = vunpack.c.l.bf16 %v285
          %v291 = vunpack.c.l.bf16 %v286
          %v292 = vunpack.c.l.bf16 %v287
          %v293 = vstv %s241
          %v294 = vmul.f32 %v293, %v288
          %v295 = vmul.f32 %v293, %v289
          %v296 = vmul.f32 %v293, %v290
          %v297 = vmul.f32 %v293, %v291
          %v298 = vmul.f32 %v293, %v292
          %v299 = vadd.f32 %v277, %v294
          %v300 = vadd.f32 %v278, %v295
          %v301 = vadd.f32 %v279, %v296
          %v302 = vadd.f32 %v280, %v297
          %v303 = vadd.f32 %v281, %v298
          %s304 = scalar_lea.vmem %s2, 60
          %v305 = vld [vmem:[%s304] sm:$0xf]
          %v306 = vld [vmem:[%s304 + $0x4] sm:$0xf]
          %v307 = vld [vmem:[%s304 + $0x8] sm:$0xf]
          %v308 = vld [vmem:[%s304 + $0xc] sm:$0xf]
          %v309 = vld [vmem:[%s304 + $0x10] sm:$0x3]
          %v310 = vunpack.c.l.bf16 %v305
          %v311 = vunpack.c.l.bf16 %v306
          %v312 = vunpack.c.l.bf16 %v307
          %v313 = vunpack.c.l.bf16 %v308
          %v314 = vunpack.c.l.bf16 %v309
          %v315 = vstv %s243
          %v316 = vmul.f32 %v315, %v310
          %v317 = vmul.f32 %v315, %v311
          %v318 = vmul.f32 %v315, %v312
          %v319 = vmul.f32 %v315, %v313
          %v320 = vmul.f32 %v315, %v314
          %v321 = vadd.f32 %v299, %v316
          %v322 = vadd.f32 %v300, %v317
          %v323 = vadd.f32 %v301, %v318
          %v324 = vadd.f32 %v302, %v319
          %v325 = vadd.f32 %v303, %v320
          %s326 = scalar_lea.vmem %s2, 80
          %v327 = vld [vmem:[%s326] sm:$0xf]
          %v328 = vld [vmem:[%s326 + $0x4] sm:$0xf]
          %v329 = vld [vmem:[%s326 + $0x8] sm:$0xf]
          %v330 = vld [vmem:[%s326 + $0xc] sm:$0xf]
          %v331 = vld [vmem:[%s326 + $0x10] sm:$0x3]
          %v332 = vunpack.c.l.bf16 %v327
          %v333 = vunpack.c.l.bf16 %v328
          %v334 = vunpack.c.l.bf16 %v329
          %v335 = vunpack.c.l.bf16 %v330
          %v336 = vunpack.c.l.bf16 %v331
          %v337 = vstv %s245
          %v338 = vmul.f32 %v337, %v332
          %v339 = vmul.f32 %v337, %v333
          %v340 = vmul.f32 %v337, %v334
          %v341 = vmul.f32 %v337, %v335
          %v342 = vmul.f32 %v337, %v336
          %v343 = vadd.f32 %v321, %v338
          %v344 = vadd.f32 %v322, %v339
          %v345 = vadd.f32 %v323, %v340
          %v346 = vadd.f32 %v324, %v341
          %v347 = vadd.f32 %v325, %v342
          %v348 = vpack.c.bf16 %v343, %v343
          %v349 = vpack.c.bf16 %v344, %v344
          %v350 = vpack.c.bf16 %v345, %v345
          %v351 = vpack.c.bf16 %v346, %v346
          %v352 = vpack.c.bf16 %v347, %v347
          %vm353 = vcmask 60416
          %354 = vst.msk [vmem:[#allocation2] sm:$0xf] %vm353, %v348
          %355 = vst.msk [vmem:[#allocation2 + $0x4] sm:$0xf] %vm353, %v349
          %356 = vst.msk [vmem:[#allocation2 + $0x8] sm:$0xf] %vm353, %v350
          %357 = vst.msk [vmem:[#allocation2 + $0xc] sm:$0xf] %vm353, %v351
          %vm358 = vcmask 58368
          %359 = vst.msk [vmem:[#allocation2 + $0x10] sm:$0x3] %vm358, %v352
        $region44: #{conv2d_dynamic_forward.1} parent=35 // pred_fallthru
          _
        %s360 = smul.u32 %s21, 16
        %s361 = smul.u32 %s360, 3
        %s362 = smul.addr %s361, 4
        %s363 = scalar_lea.vmem %s225, %s362
        %v364 = vld [vmem:[%s363] sm:$0xf]
        %v365 = vld [vmem:[%s363 + $0x4] sm:$0xf]
        %v366 = vld [vmem:[%s363 + $0xc] sm:$0xf]
        %v367 = vld [vmem:[%s363 + $0x10] sm:$0xf]
        %v368 = vld [vmem:[%s363 + $0x18] sm:$0xf]
        %v369 = vld [vmem:[%s363 + $0x1c] sm:$0xf]
        %v370 = vld [vmem:[%s363 + $0x24] sm:$0xf]
        %v371 = vld [vmem:[%s363 + $0x28] sm:$0xf]
        %v372 = vld [vmem:[%s363 + $0x30] sm:$0xf]
        %v373 = vld [vmem:[%s363 + $0x34] sm:$0xf]
        %v374 = vld [vmem:[%s363 + $0x3c] sm:$0xf]
        %v375 = vld [vmem:[%s363 + $0x40] sm:$0xf]
        %v376 = vld [vmem:[%s363 + $0x48] sm:$0xf]
        %v377 = vld [vmem:[%s363 + $0x4c] sm:$0xf]
        %v378 = vld [vmem:[%s363 + $0x54] sm:$0xf]
        %v379 = vld [vmem:[%s363 + $0x58] sm:$0xf]
        %v380 = vld [vmem:[%s363 + $0x60] sm:$0xf]
        %v381 = vld [vmem:[%s363 + $0x64] sm:$0xf]
        %v382 = vld [vmem:[%s363 + $0x6c] sm:$0xf]
        %v383 = vld [vmem:[%s363 + $0x70] sm:$0xf]
        %v384 = vld [vmem:[%s363 + $0x78] sm:$0xf]
        %v385 = vld [vmem:[%s363 + $0x7c] sm:$0xf]
        %v386 = vld [vmem:[%s363 + $0x84] sm:$0xf]
        %v387 = vld [vmem:[%s363 + $0x88] sm:$0xf]
        %v388 = vld [vmem:[%s363 + $0x90] sm:$0xf]
        %v389 = vld [vmem:[%s363 + $0x94] sm:$0xf]
        %v390 = vld [vmem:[%s363 + $0x9c] sm:$0xf]
        %v391 = vld [vmem:[%s363 + $0xa0] sm:$0xf]
        %v392 = vld [vmem:[%s363 + $0xa8] sm:$0xf]
        %v393 = vld [vmem:[%s363 + $0xac] sm:$0xf]
        %v394 = vld [vmem:[%s363 + $0xb4] sm:$0xf]
        %v395 = vld [vmem:[%s363 + $0xb8] sm:$0xf]
        %v396 = vld [vmem:[%s363 + $0x8] sm:$0x1]
        %v397 = vld [vmem:[%s363 + $0x14] sm:$0x1]
        %v398 = vld [vmem:[%s363 + $0x20] sm:$0x1]
        %v399 = vld [vmem:[%s363 + $0x2c] sm:$0x1]
        %v400 = vld [vmem:[%s363 + $0x38] sm:$0x1]
        %v401 = vld [vmem:[%s363 + $0x44] sm:$0x1]
        %v402 = vld [vmem:[%s363 + $0x50] sm:$0x1]
        %v403 = vld [vmem:[%s363 + $0x5c] sm:$0x1]
        %v404 = vld [vmem:[%s363 + $0x68] sm:$0x1]
        %v405 = vld [vmem:[%s363 + $0x74] sm:$0x1]
        %v406 = vld [vmem:[%s363 + $0x80] sm:$0x1]
        %v407 = vld [vmem:[%s363 + $0x8c] sm:$0x1]
        %v408 = vld [vmem:[%s363 + $0x98] sm:$0x1]
        %v409 = vld [vmem:[%s363 + $0xa4] sm:$0x1]
        %v410 = vld [vmem:[%s363 + $0xb0] sm:$0x1]
        %v411 = vld [vmem:[%s363 + $0xbc] sm:$0x1]
        %vm412 = vsmask.f32 3328
        %vm413 = vsmask.f32 7440
        %vm414 = vmor %vm412, %vm413
        %v416 = vshrl.u32 %v364, 16
        %v418 = vrot.slane %v416, 4
        %v419 = vshll.u32 %v364, 16
        %v421 = vrot.slane %v419, 5
        %v422 = vor.u32 %v418, %v421
        %v423 = vrot.slane %v422, 4
        %v425 = vshll.u32 %v365, 16
        %v427 = vrot.slane %v425, 5
        %v428 = vsel %vm414, %v423, %v427
        %v429 = vshrl.u32 %v365, 16
        %v431 = vrot.slane %v429, 4
        %v432 = vor.u32 %v431, %v427
        %v433 = vrot.slane %v432, 4
        %v435 = vshll.u32 %v396, 16
        %v437 = vrot.slane %v435, 5
        %v438 = vsel %vm414, %v433, %v437
        %v440 = vshrl.u32 %v366, 16
        %v442 = vrot.slane %v440, 4
        %v443 = vshll.u32 %v366, 16
        %v445 = vrot.slane %v443, 5
        %v446 = vor.u32 %v442, %v445
        %v447 = vrot.slane %v446, 4
        %v449 = vshll.u32 %v367, 16
        %v451 = vrot.slane %v449, 5
        %v452 = vsel %vm414, %v447, %v451
        %v453 = vshrl.u32 %v367, 16
        %v455 = vrot.slane %v453, 4
        %v456 = vor.u32 %v455, %v451
        %v457 = vrot.slane %v456, 4
        %v459 = vshll.u32 %v397, 16
        %v461 = vrot.slane %v459, 5
        %v462 = vsel %vm414, %v457, %v461
        %v464 = vshrl.u32 %v368, 16
        %v466 = vrot.slane %v464, 4
        %v467 = vshll.u32 %v368, 16
        %v469 = vrot.slane %v467, 5
        %v470 = vor.u32 %v466, %v469
        %v471 = vrot.slane %v470, 4
        %v473 = vshll.u32 %v369, 16
        %v475 = vrot.slane %v473, 5
        %v476 = vsel %vm414, %v471, %v475
        %v477 = vshrl.u32 %v369, 16
        %v479 = vrot.slane %v477, 4
        %v480 = vor.u32 %v479, %v475
        %v481 = vrot.slane %v480, 4
        %v483 = vshll.u32 %v398, 16
        %v485 = vrot.slane %v483, 5
        %v486 = vsel %vm414, %v481, %v485
        %v488 = vshrl.u32 %v370, 16
        %v490 = vrot.slane %v488, 4
        %v491 = vshll.u32 %v370, 16
        %v493 = vrot.slane %v491, 5
        %v494 = vor.u32 %v490, %v493
        %v495 = vrot.slane %v494, 4
        %v497 = vshll.u32 %v371, 16
        %v499 = vrot.slane %v497, 5
        %v500 = vsel %vm414, %v495, %v499
        %v501 = vshrl.u32 %v371, 16
        %v503 = vrot.slane %v501, 4
        %v504 = vor.u32 %v503, %v499
        %v505 = vrot.slane %v504, 4
        %v507 = vshll.u32 %v399, 16
        %v509 = vrot.slane %v507, 5
        %v510 = vsel %vm414, %v505, %v509
        %v512 = vshrl.u32 %v372, 16
        %v514 = vrot.slane %v512, 4
        %v515 = vshll.u32 %v372, 16
        %v517 = vrot.slane %v515, 5
        %v518 = vor.u32 %v514, %v517
        %v519 = vrot.slane %v518, 4
        %v521 = vshll.u32 %v373, 16
        %v523 = vrot.slane %v521, 5
        %v524 = vsel %vm414, %v519, %v523
        %v525 = vshrl.u32 %v373, 16
        %v527 = vrot.slane %v525, 4
        %v528 = vor.u32 %v527, %v523
        %v529 = vrot.slane %v528, 4
        %v531 = vshll.u32 %v400, 16
        %v533 = vrot.slane %v531, 5
        %v534 = vsel %vm414, %v529, %v533
        %v536 = vshrl.u32 %v374, 16
        %v538 = vrot.slane %v536, 4
        %v539 = vshll.u32 %v374, 16
        %v541 = vrot.slane %v539, 5
        %v542 = vor.u32 %v538, %v541
        %v543 = vrot.slane %v542, 4
        %v545 = vshll.u32 %v375, 16
        %v547 = vrot.slane %v545, 5
        %v548 = vsel %vm414, %v543, %v547
        %v549 = vshrl.u32 %v375, 16
        %v551 = vrot.slane %v549, 4
        %v552 = vor.u32 %v551, %v547
        %v553 = vrot.slane %v552, 4
        %v555 = vshll.u32 %v401, 16
        %v557 = vrot.slane %v555, 5
        %v558 = vsel %vm414, %v553, %v557
        %v560 = vshrl.u32 %v376, 16
        %v562 = vrot.slane %v560, 4
        %v563 = vshll.u32 %v376, 16
        %v565 = vrot.slane %v563, 5
        %v566 = vor.u32 %v562, %v565
        %v567 = vrot.slane %v566, 4
        %v569 = vshll.u32 %v377, 16
        %v571 = vrot.slane %v569, 5
        %v572 = vsel %vm414, %v567, %v571
        %v573 = vshrl.u32 %v377, 16
        %v575 = vrot.slane %v573, 4
        %v576 = vor.u32 %v575, %v571
        %v577 = vrot.slane %v576, 4
        %v579 = vshll.u32 %v402, 16
        %v581 = vrot.slane %v579, 5
        %v582 = vsel %vm414, %v577, %v581
        %v584 = vshrl.u32 %v378, 16
        %v586 = vrot.slane %v584, 4
        %v587 = vshll.u32 %v378, 16
        %v589 = vrot.slane %v587, 5
        %v590 = vor.u32 %v586, %v589
        %v591 = vrot.slane %v590, 4
        %v593 = vshll.u32 %v379, 16
        %v595 = vrot.slane %v593, 5
        %v596 = vsel %vm414, %v591, %v595
        %v597 = vshrl.u32 %v379, 16
        %v599 = vrot.slane %v597, 4
        %v600 = vor.u32 %v599, %v595
        %v601 = vrot.slane %v600, 4
        %v603 = vshll.u32 %v403, 16
        %v605 = vrot.slane %v603, 5
        %v606 = vsel %vm414, %v601, %v605
        %v608 = vshrl.u32 %v380, 16
        %v610 = vrot.slane %v608, 4
        %v611 = vshll.u32 %v380, 16
        %v613 = vrot.slane %v611, 5
        %v614 = vor.u32 %v610, %v613
        %v615 = vrot.slane %v614, 4
        %v617 = vshll.u32 %v381, 16
        %v619 = vrot.slane %v617, 5
        %v620 = vsel %vm414, %v615, %v619
        %v621 = vshrl.u32 %v381, 16
        %v623 = vrot.slane %v621, 4
        %v624 = vor.u32 %v623, %v619
        %v625 = vrot.slane %v624, 4
        %v627 = vshll.u32 %v404, 16
        %v629 = vrot.slane %v627, 5
        %v630 = vsel %vm414, %v625, %v629
        %v632 = vshrl.u32 %v382, 16
        %v634 = vrot.slane %v632, 4
        %v635 = vshll.u32 %v382, 16
        %v637 = vrot.slane %v635, 5
        %v638 = vor.u32 %v634, %v637
        %v639 = vrot.slane %v638, 4
        %v641 = vshll.u32 %v383, 16
        %v643 = vrot.slane %v641, 5
        %v644 = vsel %vm414, %v639, %v643
        %v645 = vshrl.u32 %v383, 16
        %v647 = vrot.slane %v645, 4
        %v648 = vor.u32 %v647, %v643
        %v649 = vrot.slane %v648, 4
        %v651 = vshll.u32 %v405, 16
        %v653 = vrot.slane %v651, 5
        %v654 = vsel %vm414, %v649, %v653
        %v656 = vshrl.u32 %v384, 16
        %v658 = vrot.slane %v656, 4
        %v659 = vshll.u32 %v384, 16
        %v661 = vrot.slane %v659, 5
        %v662 = vor.u32 %v658, %v661
        %v663 = vrot.slane %v662, 4
        %v665 = vshll.u32 %v385, 16
        %v667 = vrot.slane %v665, 5
        %v668 = vsel %vm414, %v663, %v667
        %v669 = vshrl.u32 %v385, 16
        %v671 = vrot.slane %v669, 4
        %v672 = vor.u32 %v671, %v667
        %v673 = vrot.slane %v672, 4
        %v675 = vshll.u32 %v406, 16
        %v677 = vrot.slane %v675, 5
        %v678 = vsel %vm414, %v673, %v677
        %v680 = vshrl.u32 %v386, 16
        %v682 = vrot.slane %v680, 4
        %v683 = vshll.u32 %v386, 16
        %v685 = vrot.slane %v683, 5
        %v686 = vor.u32 %v682, %v685
        %v687 = vrot.slane %v686, 4
        %v689 = vshll.u32 %v387, 16
        %v691 = vrot.slane %v689, 5
        %v692 = vsel %vm414, %v687, %v691
        %v693 = vshrl.u32 %v387, 16
        %v695 = vrot.slane %v693, 4
        %v696 = vor.u32 %v695, %v691
        %v697 = vrot.slane %v696, 4
        %v699 = vshll.u32 %v407, 16
        %v701 = vrot.slane %v699, 5
        %v702 = vsel %vm414, %v697, %v701
        %v704 = vshrl.u32 %v388, 16
        %v706 = vrot.slane %v704, 4
        %v707 = vshll.u32 %v388, 16
        %v709 = vrot.slane %v707, 5
        %v710 = vor.u32 %v706, %v709
        %v711 = vrot.slane %v710, 4
        %v713 = vshll.u32 %v389, 16
        %v715 = vrot.slane %v713, 5
        %v716 = vsel %vm414, %v711, %v715
        %v717 = vshrl.u32 %v389, 16
        %v719 = vrot.slane %v717, 4
        %v720 = vor.u32 %v719, %v715
        %v721 = vrot.slane %v720, 4
        %v723 = vshll.u32 %v408, 16
        %v725 = vrot.slane %v723, 5
        %v726 = vsel %vm414, %v721, %v725
        %v728 = vshrl.u32 %v390, 16
        %v730 = vrot.slane %v728, 4
        %v731 = vshll.u32 %v390, 16
        %v733 = vrot.slane %v731, 5
        %v734 = vor.u32 %v730, %v733
        %v735 = vrot.slane %v734, 4
        %v737 = vshll.u32 %v391, 16
        %v739 = vrot.slane %v737, 5
        %v740 = vsel %vm414, %v735, %v739
        %v741 = vshrl.u32 %v391, 16
        %v743 = vrot.slane %v741, 4
        %v744 = vor.u32 %v743, %v739
        %v745 = vrot.slane %v744, 4
        %v747 = vshll.u32 %v409, 16
        %v749 = vrot.slane %v747, 5
        %v750 = vsel %vm414, %v745, %v749
        %v752 = vshrl.u32 %v392, 16
        %v754 = vrot.slane %v752, 4
        %v755 = vshll.u32 %v392, 16
        %v757 = vrot.slane %v755, 5
        %v758 = vor.u32 %v754, %v757
        %v759 = vrot.slane %v758, 4
        %v761 = vshll.u32 %v393, 16
        %v763 = vrot.slane %v761, 5
        %v764 = vsel %vm414, %v759, %v763
        %v765 = vshrl.u32 %v393, 16
        %v767 = vrot.slane %v765, 4
        %v768 = vor.u32 %v767, %v763
        %v769 = vrot.slane %v768, 4
        %v771 = vshll.u32 %v410, 16
        %v773 = vrot.slane %v771, 5
        %v774 = vsel %vm414, %v769, %v773
        %v776 = vshrl.u32 %v394, 16
        %v778 = vrot.slane %v776, 4
        %v779 = vshll.u32 %v394, 16
        %v781 = vrot.slane %v779, 5
        %v782 = vor.u32 %v778, %v781
        %v783 = vrot.slane %v782, 4
        %v785 = vshll.u32 %v395, 16
        %v787 = vrot.slane %v785, 5
        %v788 = vsel %vm414, %v783, %v787
        %v789 = vshrl.u32 %v395, 16
        %v791 = vrot.slane %v789, 4
        %v792 = vor.u32 %v791, %v787
        %v793 = vrot.slane %v792, 4
        %v795 = vshll.u32 %v411, 16
        %v797 = vrot.slane %v795, 5
        %v798 = vsel %vm414, %v793, %v797
        %v799 = vld [vmem:[%s363] sm:$0xe]
        %v800 = vld [vmem:[%s363 + $0xc] sm:$0xe]
        %v801 = vld [vmem:[%s363 + $0x18] sm:$0xe]
        %v802 = vld [vmem:[%s363 + $0x24] sm:$0xe]
        %v803 = vld [vmem:[%s363 + $0x30] sm:$0xe]
        %v804 = vld [vmem:[%s363 + $0x3c] sm:$0xe]
        %v805 = vld [vmem:[%s363 + $0x48] sm:$0xe]
        %v806 = vld [vmem:[%s363 + $0x54] sm:$0xe]
        %v807 = vld [vmem:[%s363 + $0x60] sm:$0xe]
        %v808 = vld [vmem:[%s363 + $0x6c] sm:$0xe]
        %v809 = vld [vmem:[%s363 + $0x78] sm:$0xe]
        %v810 = vld [vmem:[%s363 + $0x84] sm:$0xe]
        %v811 = vld [vmem:[%s363 + $0x90] sm:$0xe]
        %v812 = vld [vmem:[%s363 + $0x9c] sm:$0xe]
        %v813 = vld [vmem:[%s363 + $0xa8] sm:$0xe]
        %v814 = vld [vmem:[%s363 + $0xb4] sm:$0xe]
        %vm863 = vcmask 1042432
        %vm864 = vcmask 1046532
        %vm865 = vmor %vm863, %vm864
        %v866 = vrot.slane %v799, 5
        %v867 = vrot.slane %v866, 4
        %v868 = vrot.slane %v365, 5
        %v869 = vsel %vm865, %v867, %v868
        %v870 = vrot.slane %v868, 4
        %v871 = vrot.slane %v396, 5
        %v872 = vsel %vm865, %v870, %v871
        %v873 = vrot.slane %v800, 5
        %v874 = vrot.slane %v873, 4
        %v875 = vrot.slane %v367, 5
        %v876 = vsel %vm865, %v874, %v875
        %v877 = vrot.slane %v875, 4
        %v878 = vrot.slane %v397, 5
        %v879 = vsel %vm865, %v877, %v878
        %v880 = vrot.slane %v801, 5
        %v881 = vrot.slane %v880, 4
        %v882 = vrot.slane %v369, 5
        %v883 = vsel %vm865, %v881, %v882
        %v884 = vrot.slane %v882, 4
        %v885 = vrot.slane %v398, 5
        %v886 = vsel %vm865, %v884, %v885
        %v887 = vrot.slane %v802, 5
        %v888 = vrot.slane %v887, 4
        %v889 = vrot.slane %v371, 5
        %v890 = vsel %vm865, %v888, %v889
        %v891 = vrot.slane %v889, 4
        %v892 = vrot.slane %v399, 5
        %v893 = vsel %vm865, %v891, %v892
        %v894 = vrot.slane %v803, 5
        %v895 = vrot.slane %v894, 4
        %v896 = vrot.slane %v373, 5
        %v897 = vsel %vm865, %v895, %v896
        %v898 = vrot.slane %v896, 4
        %v899 = vrot.slane %v400, 5
        %v900 = vsel %vm865, %v898, %v899
        %v901 = vrot.slane %v804, 5
        %v902 = vrot.slane %v901, 4
        %v903 = vrot.slane %v375, 5
        %v904 = vsel %vm865, %v902, %v903
        %v905 = vrot.slane %v903, 4
        %v906 = vrot.slane %v401, 5
        %v907 = vsel %vm865, %v905, %v906
        %v908 = vrot.slane %v805, 5
        %v909 = vrot.slane %v908, 4
        %v910 = vrot.slane %v377, 5
        %v911 = vsel %vm865, %v909, %v910
        %v912 = vrot.slane %v910, 4
        %v913 = vrot.slane %v402, 5
        %v914 = vsel %vm865, %v912, %v913
        %v915 = vrot.slane %v806, 5
        %v916 = vrot.slane %v915, 4
        %v917 = vrot.slane %v379, 5
        %v918 = vsel %vm865, %v916, %v917
        %v919 = vrot.slane %v917, 4
        %v920 = vrot.slane %v403, 5
        %v921 = vsel %vm865, %v919, %v920
        %v922 = vrot.slane %v807, 5
        %v923 = vrot.slane %v922, 4
        %v924 = vrot.slane %v381, 5
        %v925 = vsel %vm865, %v923, %v924
        %v926 = vrot.slane %v924, 4
        %v927 = vrot.slane %v404, 5
        %v928 = vsel %vm865, %v926, %v927
        %v929 = vrot.slane %v808, 5
        %v930 = vrot.slane %v929, 4
        %v931 = vrot.slane %v383, 5
        %v932 = vsel %vm865, %v930, %v931
        %v933 = vrot.slane %v931, 4
        %v934 = vrot.slane %v405, 5
        %v935 = vsel %vm865, %v933, %v934
        %v936 = vrot.slane %v809, 5
        %v937 = vrot.slane %v936, 4
        %v938 = vrot.slane %v385, 5
        %v939 = vsel %vm865, %v937, %v938
        %v940 = vrot.slane %v938, 4
        %v941 = vrot.slane %v406, 5
        %v942 = vsel %vm865, %v940, %v941
        %v943 = vrot.slane %v810, 5
        %v944 = vrot.slane %v943, 4
        %v945 = vrot.slane %v387, 5
        %v946 = vsel %vm865, %v944, %v945
        %v947 = vrot.slane %v945, 4
        %v948 = vrot.slane %v407, 5
        %v949 = vsel %vm865, %v947, %v948
        %v950 = vrot.slane %v811, 5
        %v951 = vrot.slane %v950, 4
        %v952 = vrot.slane %v389, 5
        %v953 = vsel %vm865, %v951, %v952
        %v954 = vrot.slane %v952, 4
        %v955 = vrot.slane %v408, 5
        %v956 = vsel %vm865, %v954, %v955
        %v957 = vrot.slane %v812, 5
        %v958 = vrot.slane %v957, 4
        %v959 = vrot.slane %v391, 5
        %v960 = vsel %vm865, %v958, %v959
        %v961 = vrot.slane %v959, 4
        %v962 = vrot.slane %v409, 5
        %v963 = vsel %vm865, %v961, %v962
        %v964 = vrot.slane %v813, 5
        %v965 = vrot.slane %v964, 4
        %v966 = vrot.slane %v393, 5
        %v967 = vsel %vm865, %v965, %v966
        %v968 = vrot.slane %v966, 4
        %v969 = vrot.slane %v410, 5
        %v970 = vsel %vm865, %v968, %v969
        %v971 = vrot.slane %v814, 5
        %v972 = vrot.slane %v971, 4
        %v973 = vrot.slane %v395, 5
        %v974 = vsel %vm865, %v972, %v973
        %v975 = vrot.slane %v973, 4
        %v976 = vrot.slane %v411, 5
        %v977 = vsel %vm865, %v975, %v976
        %s978 = sadd.s32 %s360, 1
        %s979 = smul.u32 %s978, 3
        %s980 = smul.addr %s979, 4
        %s981 = scalar_lea.vmem %s225, %s980
        %v982 = vld [vmem:[%s981] sm:$0xf]
        %v983 = vld [vmem:[%s981 + $0x4] sm:$0xf]
        %v984 = vld [vmem:[%s981 + $0xc] sm:$0xf]
        %v985 = vld [vmem:[%s981 + $0x10] sm:$0xf]
        %v986 = vld [vmem:[%s981 + $0x18] sm:$0xf]
        %v987 = vld [vmem:[%s981 + $0x1c] sm:$0xf]
        %v988 = vld [vmem:[%s981 + $0x24] sm:$0xf]
        %v989 = vld [vmem:[%s981 + $0x28] sm:$0xf]
        %v990 = vld [vmem:[%s981 + $0x30] sm:$0xf]
        %v991 = vld [vmem:[%s981 + $0x34] sm:$0xf]
        %v992 = vld [vmem:[%s981 + $0x3c] sm:$0xf]
        %v993 = vld [vmem:[%s981 + $0x40] sm:$0xf]
        %v994 = vld [vmem:[%s981 + $0x48] sm:$0xf]
        %v995 = vld [vmem:[%s981 + $0x4c] sm:$0xf]
        %v996 = vld [vmem:[%s981 + $0x54] sm:$0xf]
        %v997 = vld [vmem:[%s981 + $0x58] sm:$0xf]
        %v998 = vld [vmem:[%s981 + $0x60] sm:$0xf]
        %v999 = vld [vmem:[%s981 + $0x64] sm:$0xf]
        %v1000 = vld [vmem:[%s981 + $0x6c] sm:$0xf]
        %v1001 = vld [vmem:[%s981 + $0x70] sm:$0xf]
        %v1002 = vld [vmem:[%s981 + $0x78] sm:$0xf]
        %v1003 = vld [vmem:[%s981 + $0x7c] sm:$0xf]
        %v1004 = vld [vmem:[%s981 + $0x84] sm:$0xf]
        %v1005 = vld [vmem:[%s981 + $0x88] sm:$0xf]
        %v1006 = vld [vmem:[%s981 + $0x90] sm:$0xf]
        %v1007 = vld [vmem:[%s981 + $0x94] sm:$0xf]
        %v1008 = vld [vmem:[%s981 + $0x9c] sm:$0xf]
        %v1009 = vld [vmem:[%s981 + $0xa0] sm:$0xf]
        %v1010 = vld [vmem:[%s981 + $0xa8] sm:$0xf]
        %v1011 = vld [vmem:[%s981 + $0xac] sm:$0xf]
        %v1012 = vld [vmem:[%s981 + $0xb4] sm:$0xf]
        %v1013 = vld [vmem:[%s981 + $0xb8] sm:$0xf]
        %v1014 = vld [vmem:[%s981 + $0x8] sm:$0x1]
        %v1015 = vld [vmem:[%s981 + $0x14] sm:$0x1]
        %v1016 = vld [vmem:[%s981 + $0x20] sm:$0x1]
        %v1017 = vld [vmem:[%s981 + $0x2c] sm:$0x1]
        %v1018 = vld [vmem:[%s981 + $0x38] sm:$0x1]
        %v1019 = vld [vmem:[%s981 + $0x44] sm:$0x1]
        %v1020 = vld [vmem:[%s981 + $0x50] sm:$0x1]
        %v1021 = vld [vmem:[%s981 + $0x5c] sm:$0x1]
        %v1022 = vld [vmem:[%s981 + $0x68] sm:$0x1]
        %v1023 = vld [vmem:[%s981 + $0x74] sm:$0x1]
        %v1024 = vld [vmem:[%s981 + $0x80] sm:$0x1]
        %v1025 = vld [vmem:[%s981 + $0x8c] sm:$0x1]
        %v1026 = vld [vmem:[%s981 + $0x98] sm:$0x1]
        %v1027 = vld [vmem:[%s981 + $0xa4] sm:$0x1]
        %v1028 = vld [vmem:[%s981 + $0xb0] sm:$0x1]
        %v1029 = vld [vmem:[%s981 + $0xbc] sm:$0x1]
        %v1031 = vshrl.u32 %v982, 16
        %v1033 = vrot.slane %v1031, 4
        %v1034 = vshll.u32 %v982, 16
        %v1036 = vrot.slane %v1034, 5
        %v1037 = vor.u32 %v1033, %v1036
        %v1038 = vrot.slane %v1037, 4
        %v1040 = vshll.u32 %v983, 16
        %v1042 = vrot.slane %v1040, 5
        %v1043 = vsel %vm414, %v1038, %v1042
        %v1044 = vshrl.u32 %v983, 16
        %v1046 = vrot.slane %v1044, 4
        %v1047 = vor.u32 %v1046, %v1042
        %v1048 = vrot.slane %v1047, 4
        %v1050 = vshll.u32 %v1014, 16
        %v1052 = vrot.slane %v1050, 5
        %v1053 = vsel %vm414, %v1048, %v1052
        %v1055 = vshrl.u32 %v984, 16
        %v1057 = vrot.slane %v1055, 4
        %v1058 = vshll.u32 %v984, 16
        %v1060 = vrot.slane %v1058, 5
        %v1061 = vor.u32 %v1057, %v1060
        %v1062 = vrot.slane %v1061, 4
        %v1064 = vshll.u32 %v985, 16
        %v1066 = vrot.slane %v1064, 5
        %v1067 = vsel %vm414, %v1062, %v1066
        %v1068 = vshrl.u32 %v985, 16
        %v1070 = vrot.slane %v1068, 4
        %v1071 = vor.u32 %v1070, %v1066
        %v1072 = vrot.slane %v1071, 4
        %v1074 = vshll.u32 %v1015, 16
        %v1076 = vrot.slane %v1074, 5
        %v1077 = vsel %vm414, %v1072, %v1076
        %v1079 = vshrl.u32 %v986, 16
        %v1081 = vrot.slane %v1079, 4
        %v1082 = vshll.u32 %v986, 16
        %v1084 = vrot.slane %v1082, 5
        %v1085 = vor.u32 %v1081, %v1084
        %v1086 = vrot.slane %v1085, 4
        %v1088 = vshll.u32 %v987, 16
        %v1090 = vrot.slane %v1088, 5
        %v1091 = vsel %vm414, %v1086, %v1090
        %v1092 = vshrl.u32 %v987, 16
        %v1094 = vrot.slane %v1092, 4
        %v1095 = vor.u32 %v1094, %v1090
        %v1096 = vrot.slane %v1095, 4
        %v1098 = vshll.u32 %v1016, 16
        %v1100 = vrot.slane %v1098, 5
        %v1101 = vsel %vm414, %v1096, %v1100
        %v1103 = vshrl.u32 %v988, 16
        %v1105 = vrot.slane %v1103, 4
        %v1106 = vshll.u32 %v988, 16
        %v1108 = vrot.slane %v1106, 5
        %v1109 = vor.u32 %v1105, %v1108
        %v1110 = vrot.slane %v1109, 4
        %v1112 = vshll.u32 %v989, 16
        %v1114 = vrot.slane %v1112, 5
        %v1115 = vsel %vm414, %v1110, %v1114
        %v1116 = vshrl.u32 %v989, 16
        %v1118 = vrot.slane %v1116, 4
        %v1119 = vor.u32 %v1118, %v1114
        %v1120 = vrot.slane %v1119, 4
        %v1122 = vshll.u32 %v1017, 16
        %v1124 = vrot.slane %v1122, 5
        %v1125 = vsel %vm414, %v1120, %v1124
        %v1127 = vshrl.u32 %v990, 16
        %v1129 = vrot.slane %v1127, 4
        %v1130 = vshll.u32 %v990, 16
        %v1132 = vrot.slane %v1130, 5
        %v1133 = vor.u32 %v1129, %v1132
        %v1134 = vrot.slane %v1133, 4
        %v1136 = vshll.u32 %v991, 16
        %v1138 = vrot.slane %v1136, 5
        %v1139 = vsel %vm414, %v1134, %v1138
        %v1140 = vshrl.u32 %v991, 16
        %v1142 = vrot.slane %v1140, 4
        %v1143 = vor.u32 %v1142, %v1138
        %v1144 = vrot.slane %v1143, 4
        %v1146 = vshll.u32 %v1018, 16
        %v1148 = vrot.slane %v1146, 5
        %v1149 = vsel %vm414, %v1144, %v1148
        %v1151 = vshrl.u32 %v992, 16
        %v1153 = vrot.slane %v1151, 4
        %v1154 = vshll.u32 %v992, 16
        %v1156 = vrot.slane %v1154, 5
        %v1157 = vor.u32 %v1153, %v1156
        %v1158 = vrot.slane %v1157, 4
        %v1160 = vshll.u32 %v993, 16
        %v1162 = vrot.slane %v1160, 5
        %v1163 = vsel %vm414, %v1158, %v1162
        %v1164 = vshrl.u32 %v993, 16
        %v1166 = vrot.slane %v1164, 4
        %v1167 = vor.u32 %v1166, %v1162
        %v1168 = vrot.slane %v1167, 4
        %v1170 = vshll.u32 %v1019, 16
        %v1172 = vrot.slane %v1170, 5
        %v1173 = vsel %vm414, %v1168, %v1172
        %v1175 = vshrl.u32 %v994, 16
        %v1177 = vrot.slane %v1175, 4
        %v1178 = vshll.u32 %v994, 16
        %v1180 = vrot.slane %v1178, 5
        %v1181 = vor.u32 %v1177, %v1180
        %v1182 = vrot.slane %v1181, 4
        %v1184 = vshll.u32 %v995, 16
        %v1186 = vrot.slane %v1184, 5
        %v1187 = vsel %vm414, %v1182, %v1186
        %v1188 = vshrl.u32 %v995, 16
        %v1190 = vrot.slane %v1188, 4
        %v1191 = vor.u32 %v1190, %v1186
        %v1192 = vrot.slane %v1191, 4
        %v1194 = vshll.u32 %v1020, 16
        %v1196 = vrot.slane %v1194, 5
        %v1197 = vsel %vm414, %v1192, %v1196
        %v1199 = vshrl.u32 %v996, 16
        %v1201 = vrot.slane %v1199, 4
        %v1202 = vshll.u32 %v996, 16
        %v1204 = vrot.slane %v1202, 5
        %v1205 = vor.u32 %v1201, %v1204
        %v1206 = vrot.slane %v1205, 4
        %v1208 = vshll.u32 %v997, 16
        %v1210 = vrot.slane %v1208, 5
        %v1211 = vsel %vm414, %v1206, %v1210
        %v1212 = vshrl.u32 %v997, 16
        %v1214 = vrot.slane %v1212, 4
        %v1215 = vor.u32 %v1214, %v1210
        %v1216 = vrot.slane %v1215, 4
        %v1218 = vshll.u32 %v1021, 16
        %v1220 = vrot.slane %v1218, 5
        %v1221 = vsel %vm414, %v1216, %v1220
        %v1223 = vshrl.u32 %v998, 16
        %v1225 = vrot.slane %v1223, 4
        %v1226 = vshll.u32 %v998, 16
        %v1228 = vrot.slane %v1226, 5
        %v1229 = vor.u32 %v1225, %v1228
        %v1230 = vrot.slane %v1229, 4
        %v1232 = vshll.u32 %v999, 16
        %v1234 = vrot.slane %v1232, 5
        %v1235 = vsel %vm414, %v1230, %v1234
        %v1236 = vshrl.u32 %v999, 16
        %v1238 = vrot.slane %v1236, 4
        %v1239 = vor.u32 %v1238, %v1234
        %v1240 = vrot.slane %v1239, 4
        %v1242 = vshll.u32 %v1022, 16
        %v1244 = vrot.slane %v1242, 5
        %v1245 = vsel %vm414, %v1240, %v1244
        %v1247 = vshrl.u32 %v1000, 16
        %v1249 = vrot.slane %v1247, 4
        %v1250 = vshll.u32 %v1000, 16
        %v1252 = vrot.slane %v1250, 5
        %v1253 = vor.u32 %v1249, %v1252
        %v1254 = vrot.slane %v1253, 4
        %v1256 = vshll.u32 %v1001, 16
        %v1258 = vrot.slane %v1256, 5
        %v1259 = vsel %vm414, %v1254, %v1258
        %v1260 = vshrl.u32 %v1001, 16
        %v1262 = vrot.slane %v1260, 4
        %v1263 = vor.u32 %v1262, %v1258
        %v1264 = vrot.slane %v1263, 4
        %v1266 = vshll.u32 %v1023, 16
        %v1268 = vrot.slane %v1266, 5
        %v1269 = vsel %vm414, %v1264, %v1268
        %v1271 = vshrl.u32 %v1002, 16
        %v1273 = vrot.slane %v1271, 4
        %v1274 = vshll.u32 %v1002, 16
        %v1276 = vrot.slane %v1274, 5
        %v1277 = vor.u32 %v1273, %v1276
        %v1278 = vrot.slane %v1277, 4
        %v1280 = vshll.u32 %v1003, 16
        %v1282 = vrot.slane %v1280, 5
        %v1283 = vsel %vm414, %v1278, %v1282
        %v1284 = vshrl.u32 %v1003, 16
        %v1286 = vrot.slane %v1284, 4
        %v1287 = vor.u32 %v1286, %v1282
        %v1288 = vrot.slane %v1287, 4
        %v1290 = vshll.u32 %v1024, 16
        %v1292 = vrot.slane %v1290, 5
        %v1293 = vsel %vm414, %v1288, %v1292
        %v1295 = vshrl.u32 %v1004, 16
        %v1297 = vrot.slane %v1295, 4
        %v1298 = vshll.u32 %v1004, 16
        %v1300 = vrot.slane %v1298, 5
        %v1301 = vor.u32 %v1297, %v1300
        %v1302 = vrot.slane %v1301, 4
        %v1304 = vshll.u32 %v1005, 16
        %v1306 = vrot.slane %v1304, 5
        %v1307 = vsel %vm414, %v1302, %v1306
        %v1308 = vshrl.u32 %v1005, 16
        %v1310 = vrot.slane %v1308, 4
        %v1311 = vor.u32 %v1310, %v1306
        %v1312 = vrot.slane %v1311, 4
        %v1314 = vshll.u32 %v1025, 16
        %v1316 = vrot.slane %v1314, 5
        %v1317 = vsel %vm414, %v1312, %v1316
        %v1319 = vshrl.u32 %v1006, 16
        %v1321 = vrot.slane %v1319, 4
        %v1322 = vshll.u32 %v1006, 16
        %v1324 = vrot.slane %v1322, 5
        %v1325 = vor.u32 %v1321, %v1324
        %v1326 = vrot.slane %v1325, 4
        %v1328 = vshll.u32 %v1007, 16
        %v1330 = vrot.slane %v1328, 5
        %v1331 = vsel %vm414, %v1326, %v1330
        %v1332 = vshrl.u32 %v1007, 16
        %v1334 = vrot.slane %v1332, 4
        %v1335 = vor.u32 %v1334, %v1330
        %v1336 = vrot.slane %v1335, 4
        %v1338 = vshll.u32 %v1026, 16
        %v1340 = vrot.slane %v1338, 5
        %v1341 = vsel %vm414, %v1336, %v1340
        %v1343 = vshrl.u32 %v1008, 16
        %v1345 = vrot.slane %v1343, 4
        %v1346 = vshll.u32 %v1008, 16
        %v1348 = vrot.slane %v1346, 5
        %v1349 = vor.u32 %v1345, %v1348
        %v1350 = vrot.slane %v1349, 4
        %v1352 = vshll.u32 %v1009, 16
        %v1354 = vrot.slane %v1352, 5
        %v1355 = vsel %vm414, %v1350, %v1354
        %v1356 = vshrl.u32 %v1009, 16
        %v1358 = vrot.slane %v1356, 4
        %v1359 = vor.u32 %v1358, %v1354
        %v1360 = vrot.slane %v1359, 4
        %v1362 = vshll.u32 %v1027, 16
        %v1364 = vrot.slane %v1362, 5
        %v1365 = vsel %vm414, %v1360, %v1364
        %v1367 = vshrl.u32 %v1010, 16
        %v1369 = vrot.slane %v1367, 4
        %v1370 = vshll.u32 %v1010, 16
        %v1372 = vrot.slane %v1370, 5
        %v1373 = vor.u32 %v1369, %v1372
        %v1374 = vrot.slane %v1373, 4
        %v1376 = vshll.u32 %v1011, 16
        %v1378 = vrot.slane %v1376, 5
        %v1379 = vsel %vm414, %v1374, %v1378
        %v1380 = vshrl.u32 %v1011, 16
        %v1382 = vrot.slane %v1380, 4
        %v1383 = vor.u32 %v1382, %v1378
        %v1384 = vrot.slane %v1383, 4
        %v1386 = vshll.u32 %v1028, 16
        %v1388 = vrot.slane %v1386, 5
        %v1389 = vsel %vm414, %v1384, %v1388
        %v1391 = vshrl.u32 %v1012, 16
        %v1393 = vrot.slane %v1391, 4
        %v1394 = vshll.u32 %v1012, 16
        %v1396 = vrot.slane %v1394, 5
        %v1397 = vor.u32 %v1393, %v1396
        %v1398 = vrot.slane %v1397, 4
        %v1400 = vshll.u32 %v1013, 16
        %v1402 = vrot.slane %v1400, 5
        %v1403 = vsel %vm414, %v1398, %v1402
        %v1404 = vshrl.u32 %v1013, 16
        %v1406 = vrot.slane %v1404, 4
        %v1407 = vor.u32 %v1406, %v1402
        %v1408 = vrot.slane %v1407, 4
        %v1410 = vshll.u32 %v1029, 16
        %v1412 = vrot.slane %v1410, 5
        %v1413 = vsel %vm414, %v1408, %v1412
        %v1414 = vld [vmem:[%s981] sm:$0xe]
        %v1415 = vld [vmem:[%s981 + $0xc] sm:$0xe]
        %v1416 = vld [vmem:[%s981 + $0x18] sm:$0xe]
        %v1417 = vld [vmem:[%s981 + $0x24] sm:$0xe]
        %v1418 = vld [vmem:[%s981 + $0x30] sm:$0xe]
        %v1419 = vld [vmem:[%s981 + $0x3c] sm:$0xe]
        %v1420 = vld [vmem:[%s981 + $0x48] sm:$0xe]
        %v1421 = vld [vmem:[%s981 + $0x54] sm:$0xe]
        %v1422 = vld [vmem:[%s981 + $0x60] sm:$0xe]
        %v1423 = vld [vmem:[%s981 + $0x6c] sm:$0xe]
        %v1424 = vld [vmem:[%s981 + $0x78] sm:$0xe]
        %v1425 = vld [vmem:[%s981 + $0x84] sm:$0xe]
        %v1426 = vld [vmem:[%s981 + $0x90] sm:$0xe]
        %v1427 = vld [vmem:[%s981 + $0x9c] sm:$0xe]
        %v1428 = vld [vmem:[%s981 + $0xa8] sm:$0xe]
        %v1429 = vld [vmem:[%s981 + $0xb4] sm:$0xe]
        %v1478 = vrot.slane %v1414, 5
        %v1479 = vrot.slane %v1478, 4
        %v1480 = vrot.slane %v983, 5
        %v1481 = vsel %vm865, %v1479, %v1480
        %v1482 = vrot.slane %v1480, 4
        %v1483 = vrot.slane %v1014, 5
        %v1484 = vsel %vm865, %v1482, %v1483
        %v1485 = vrot.slane %v1415, 5
        %v1486 = vrot.slane %v1485, 4
        %v1487 = vrot.slane %v985, 5
        %v1488 = vsel %vm865, %v1486, %v1487
        %v1489 = vrot.slane %v1487, 4
        %v1490 = vrot.slane %v1015, 5
        %v1491 = vsel %vm865, %v1489, %v1490
        %v1492 = vrot.slane %v1416, 5
        %v1493 = vrot.slane %v1492, 4
        %v1494 = vrot.slane %v987, 5
        %v1495 = vsel %vm865, %v1493, %v1494
        %v1496 = vrot.slane %v1494, 4
        %v1497 = vrot.slane %v1016, 5
        %v1498 = vsel %vm865, %v1496, %v1497
        %v1499 = vrot.slane %v1417, 5
        %v1500 = vrot.slane %v1499, 4
        %v1501 = vrot.slane %v989, 5
        %v1502 = vsel %vm865, %v1500, %v1501
        %v1503 = vrot.slane %v1501, 4
        %v1504 = vrot.slane %v1017, 5
        %v1505 = vsel %vm865, %v1503, %v1504
        %v1506 = vrot.slane %v1418, 5
        %v1507 = vrot.slane %v1506, 4
        %v1508 = vrot.slane %v991, 5
        %v1509 = vsel %vm865, %v1507, %v1508
        %v1510 = vrot.slane %v1508, 4
        %v1511 = vrot.slane %v1018, 5
        %v1512 = vsel %vm865, %v1510, %v1511
        %v1513 = vrot.slane %v1419, 5
        %v1514 = vrot.slane %v1513, 4
        %v1515 = vrot.slane %v993, 5
        %v1516 = vsel %vm865, %v1514, %v1515
        %v1517 = vrot.slane %v1515, 4
        %v1518 = vrot.slane %v1019, 5
        %v1519 = vsel %vm865, %v1517, %v1518
        %v1520 = vrot.slane %v1420, 5
        %v1521 = vrot.slane %v1520, 4
        %v1522 = vrot.slane %v995, 5
        %v1523 = vsel %vm865, %v1521, %v1522
        %v1524 = vrot.slane %v1522, 4
        %v1525 = vrot.slane %v1020, 5
        %v1526 = vsel %vm865, %v1524, %v1525
        %v1527 = vrot.slane %v1421, 5
        %v1528 = vrot.slane %v1527, 4
        %v1529 = vrot.slane %v997, 5
        %v1530 = vsel %vm865, %v1528, %v1529
        %v1531 = vrot.slane %v1529, 4
        %v1532 = vrot.slane %v1021, 5
        %v1533 = vsel %vm865, %v1531, %v1532
        %v1534 = vrot.slane %v1422, 5
        %v1535 = vrot.slane %v1534, 4
        %v1536 = vrot.slane %v999, 5
        %v1537 = vsel %vm865, %v1535, %v1536
        %v1538 = vrot.slane %v1536, 4
        %v1539 = vrot.slane %v1022, 5
        %v1540 = vsel %vm865, %v1538, %v1539
        %v1541 = vrot.slane %v1423, 5
        %v1542 = vrot.slane %v1541, 4
        %v1543 = vrot.slane %v1001, 5
        %v1544 = vsel %vm865, %v1542, %v1543
        %v1545 = vrot.slane %v1543, 4
        %v1546 = vrot.slane %v1023, 5
        %v1547 = vsel %vm865, %v1545, %v1546
        %v1548 = vrot.slane %v1424, 5
        %v1549 = vrot.slane %v1548, 4
        %v1550 = vrot.slane %v1003, 5
        %v1551 = vsel %vm865, %v1549, %v1550
        %v1552 = vrot.slane %v1550, 4
        %v1553 = vrot.slane %v1024, 5
        %v1554 = vsel %vm865, %v1552, %v1553
        %v1555 = vrot.slane %v1425, 5
        %v1556 = vrot.slane %v1555, 4
        %v1557 = vrot.slane %v1005, 5
        %v1558 = vsel %vm865, %v1556, %v1557
        %v1559 = vrot.slane %v1557, 4
        %v1560 = vrot.slane %v1025, 5
        %v1561 = vsel %vm865, %v1559, %v1560
        %v1562 = vrot.slane %v1426, 5
        %v1563 = vrot.slane %v1562, 4
        %v1564 = vrot.slane %v1007, 5
        %v1565 = vsel %vm865, %v1563, %v1564
        %v1566 = vrot.slane %v1564, 4
        %v1567 = vrot.slane %v1026, 5
        %v1568 = vsel %vm865, %v1566, %v1567
        %v1569 = vrot.slane %v1427, 5
        %v1570 = vrot.slane %v1569, 4
        %v1571 = vrot.slane %v1009, 5
        %v1572 = vsel %vm865, %v1570, %v1571
        %v1573 = vrot.slane %v1571, 4
        %v1574 = vrot.slane %v1027, 5
        %v1575 = vsel %vm865, %v1573, %v1574
        %v1576 = vrot.slane %v1428, 5
        %v1577 = vrot.slane %v1576, 4
        %v1578 = vrot.slane %v1011, 5
        %v1579 = vsel %vm865, %v1577, %v1578
        %v1580 = vrot.slane %v1578, 4
        %v1581 = vrot.slane %v1028, 5
        %v1582 = vsel %vm865, %v1580, %v1581
        %v1583 = vrot.slane %v1429, 5
        %v1584 = vrot.slane %v1583, 4
        %v1585 = vrot.slane %v1013, 5
        %v1586 = vsel %vm865, %v1584, %v1585
        %v1587 = vrot.slane %v1585, 4
        %v1588 = vrot.slane %v1029, 5
        %v1589 = vsel %vm865, %v1587, %v1588
        %s1590 = sadd.s32 %s360, 2
        %s1591 = smul.u32 %s1590, 3
        %s1592 = smul.addr %s1591, 4
        %s1593 = scalar_lea.vmem %s225, %s1592
        %v1594 = vld [vmem:[%s1593] sm:$0xf]
        %v1595 = vld [vmem:[%s1593 + $0x4] sm:$0xf]
        %v1596 = vld [vmem:[%s1593 + $0xc] sm:$0xf]
        %v1597 = vld [vmem:[%s1593 + $0x10] sm:$0xf]
        %v1598 = vld [vmem:[%s1593 + $0x18] sm:$0xf]
        %v1599 = vld [vmem:[%s1593 + $0x1c] sm:$0xf]
        %v1600 = vld [vmem:[%s1593 + $0x24] sm:$0xf]
        %v1601 = vld [vmem:[%s1593 + $0x28] sm:$0xf]
        %v1602 = vld [vmem:[%s1593 + $0x30] sm:$0xf]
        %v1603 = vld [vmem:[%s1593 + $0x34] sm:$0xf]
        %v1604 = vld [vmem:[%s1593 + $0x3c] sm:$0xf]
        %v1605 = vld [vmem:[%s1593 + $0x40] sm:$0xf]
        %v1606 = vld [vmem:[%s1593 + $0x48] sm:$0xf]
        %v1607 = vld [vmem:[%s1593 + $0x4c] sm:$0xf]
        %v1608 = vld [vmem:[%s1593 + $0x54] sm:$0xf]
        %v1609 = vld [vmem:[%s1593 + $0x58] sm:$0xf]
        %v1610 = vld [vmem:[%s1593 + $0x60] sm:$0xf]
        %v1611 = vld [vmem:[%s1593 + $0x64] sm:$0xf]
        %v1612 = vld [vmem:[%s1593 + $0x6c] sm:$0xf]
        %v1613 = vld [vmem:[%s1593 + $0x70] sm:$0xf]
        %v1614 = vld [vmem:[%s1593 + $0x78] sm:$0xf]
        %v1615 = vld [vmem:[%s1593 + $0x7c] sm:$0xf]
        %v1616 = vld [vmem:[%s1593 + $0x84] sm:$0xf]
        %v1617 = vld [vmem:[%s1593 + $0x88] sm:$0xf]
        %v1618 = vld [vmem:[%s1593 + $0x90] sm:$0xf]
        %v1619 = vld [vmem:[%s1593 + $0x94] sm:$0xf]
        %v1620 = vld [vmem:[%s1593 + $0x9c] sm:$0xf]
        %v1621 = vld [vmem:[%s1593 + $0xa0] sm:$0xf]
        %v1622 = vld [vmem:[%s1593 + $0xa8] sm:$0xf]
        %v1623 = vld [vmem:[%s1593 + $0xac] sm:$0xf]
        %v1624 = vld [vmem:[%s1593 + $0xb4] sm:$0xf]
        %v1625 = vld [vmem:[%s1593 + $0xb8] sm:$0xf]
        %v1626 = vld [vmem:[%s1593 + $0x8] sm:$0x1]
        %v1627 = vld [vmem:[%s1593 + $0x14] sm:$0x1]
        %v1628 = vld [vmem:[%s1593 + $0x20] sm:$0x1]
        %v1629 = vld [vmem:[%s1593 + $0x2c] sm:$0x1]
        %v1630 = vld [vmem:[%s1593 + $0x38] sm:$0x1]
        %v1631 = vld [vmem:[%s1593 + $0x44] sm:$0x1]
        %v1632 = vld [vmem:[%s1593 + $0x50] sm:$0x1]
        %v1633 = vld [vmem:[%s1593 + $0x5c] sm:$0x1]
        %v1634 = vld [vmem:[%s1593 + $0x68] sm:$0x1]
        %v1635 = vld [vmem:[%s1593 + $0x74] sm:$0x1]
        %v1636 = vld [vmem:[%s1593 + $0x80] sm:$0x1]
        %v1637 = vld [vmem:[%s1593 + $0x8c] sm:$0x1]
        %v1638 = vld [vmem:[%s1593 + $0x98] sm:$0x1]
        %v1639 = vld [vmem:[%s1593 + $0xa4] sm:$0x1]
        %v1640 = vld [vmem:[%s1593 + $0xb0] sm:$0x1]
        %v1641 = vld [vmem:[%s1593 + $0xbc] sm:$0x1]
        %v1643 = vshrl.u32 %v1594, 16
        %v1645 = vrot.slane %v1643, 4
        %v1646 = vshll.u32 %v1594, 16
        %v1648 = vrot.slane %v1646, 5
        %v1649 = vor.u32 %v1645, %v1648
        %v1650 = vrot.slane %v1649, 4
        %v1652 = vshll.u32 %v1595, 16
        %v1654 = vrot.slane %v1652, 5
        %v1655 = vsel %vm414, %v1650, %v1654
        %v1656 = vshrl.u32 %v1595, 16
        %v1658 = vrot.slane %v1656, 4
        %v1659 = vor.u32 %v1658, %v1654
        %v1660 = vrot.slane %v1659, 4
        %v1662 = vshll.u32 %v1626, 16
        %v1664 = vrot.slane %v1662, 5
        %v1665 = vsel %vm414, %v1660, %v1664
        %v1667 = vshrl.u32 %v1596, 16
        %v1669 = vrot.slane %v1667, 4
        %v1670 = vshll.u32 %v1596, 16
        %v1672 = vrot.slane %v1670, 5
        %v1673 = vor.u32 %v1669, %v1672
        %v1674 = vrot.slane %v1673, 4
        %v1676 = vshll.u32 %v1597, 16
        %v1678 = vrot.slane %v1676, 5
        %v1679 = vsel %vm414, %v1674, %v1678
        %v1680 = vshrl.u32 %v1597, 16
        %v1682 = vrot.slane %v1680, 4
        %v1683 = vor.u32 %v1682, %v1678
        %v1684 = vrot.slane %v1683, 4
        %v1686 = vshll.u32 %v1627, 16
        %v1688 = vrot.slane %v1686, 5
        %v1689 = vsel %vm414, %v1684, %v1688
        %v1691 = vshrl.u32 %v1598, 16
        %v1693 = vrot.slane %v1691, 4
        %v1694 = vshll.u32 %v1598, 16
        %v1696 = vrot.slane %v1694, 5
        %v1697 = vor.u32 %v1693, %v1696
        %v1698 = vrot.slane %v1697, 4
        %v1700 = vshll.u32 %v1599, 16
        %v1702 = vrot.slane %v1700, 5
        %v1703 = vsel %vm414, %v1698, %v1702
        %v1704 = vshrl.u32 %v1599, 16
        %v1706 = vrot.slane %v1704, 4
        %v1707 = vor.u32 %v1706, %v1702
        %v1708 = vrot.slane %v1707, 4
        %v1710 = vshll.u32 %v1628, 16
        %v1712 = vrot.slane %v1710, 5
        %v1713 = vsel %vm414, %v1708, %v1712
        %v1715 = vshrl.u32 %v1600, 16
        %v1717 = vrot.slane %v1715, 4
        %v1718 = vshll.u32 %v1600, 16
        %v1720 = vrot.slane %v1718, 5
        %v1721 = vor.u32 %v1717, %v1720
        %v1722 = vrot.slane %v1721, 4
        %v1724 = vshll.u32 %v1601, 16
        %v1726 = vrot.slane %v1724, 5
        %v1727 = vsel %vm414, %v1722, %v1726
        %v1728 = vshrl.u32 %v1601, 16
        %v1730 = vrot.slane %v1728, 4
        %v1731 = vor.u32 %v1730, %v1726
        %v1732 = vrot.slane %v1731, 4
        %v1734 = vshll.u32 %v1629, 16
        %v1736 = vrot.slane %v1734, 5
        %v1737 = vsel %vm414, %v1732, %v1736
        %v1739 = vshrl.u32 %v1602, 16
        %v1741 = vrot.slane %v1739, 4
        %v1742 = vshll.u32 %v1602, 16
        %v1744 = vrot.slane %v1742, 5
        %v1745 = vor.u32 %v1741, %v1744
        %v1746 = vrot.slane %v1745, 4
        %v1748 = vshll.u32 %v1603, 16
        %v1750 = vrot.slane %v1748, 5
        %v1751 = vsel %vm414, %v1746, %v1750
        %v1752 = vshrl.u32 %v1603, 16
        %v1754 = vrot.slane %v1752, 4
        %v1755 = vor.u32 %v1754, %v1750
        %v1756 = vrot.slane %v1755, 4
        %v1758 = vshll.u32 %v1630, 16
        %v1760 = vrot.slane %v1758, 5
        %v1761 = vsel %vm414, %v1756, %v1760
        %v1763 = vshrl.u32 %v1604, 16
        %v1765 = vrot.slane %v1763, 4
        %v1766 = vshll.u32 %v1604, 16
        %v1768 = vrot.slane %v1766, 5
        %v1769 = vor.u32 %v1765, %v1768
        %v1770 = vrot.slane %v1769, 4
        %v1772 = vshll.u32 %v1605, 16
        %v1774 = vrot.slane %v1772, 5
        %v1775 = vsel %vm414, %v1770, %v1774
        %v1776 = vshrl.u32 %v1605, 16
        %v1778 = vrot.slane %v1776, 4
        %v1779 = vor.u32 %v1778, %v1774
        %v1780 = vrot.slane %v1779, 4
        %v1782 = vshll.u32 %v1631, 16
        %v1784 = vrot.slane %v1782, 5
        %v1785 = vsel %vm414, %v1780, %v1784
        %v1787 = vshrl.u32 %v1606, 16
        %v1789 = vrot.slane %v1787, 4
        %v1790 = vshll.u32 %v1606, 16
        %v1792 = vrot.slane %v1790, 5
        %v1793 = vor.u32 %v1789, %v1792
        %v1794 = vrot.slane %v1793, 4
        %v1796 = vshll.u32 %v1607, 16
        %v1798 = vrot.slane %v1796, 5
        %v1799 = vsel %vm414, %v1794, %v1798
        %v1800 = vshrl.u32 %v1607, 16
        %v1802 = vrot.slane %v1800, 4
        %v1803 = vor.u32 %v1802, %v1798
        %v1804 = vrot.slane %v1803, 4
        %v1806 = vshll.u32 %v1632, 16
        %v1808 = vrot.slane %v1806, 5
        %v1809 = vsel %vm414, %v1804, %v1808
        %v1811 = vshrl.u32 %v1608, 16
        %v1813 = vrot.slane %v1811, 4
        %v1814 = vshll.u32 %v1608, 16
        %v1816 = vrot.slane %v1814, 5
        %v1817 = vor.u32 %v1813, %v1816
        %v1818 = vrot.slane %v1817, 4
        %v1820 = vshll.u32 %v1609, 16
        %v1822 = vrot.slane %v1820, 5
        %v1823 = vsel %vm414, %v1818, %v1822
        %v1824 = vshrl.u32 %v1609, 16
        %v1826 = vrot.slane %v1824, 4
        %v1827 = vor.u32 %v1826, %v1822
        %v1828 = vrot.slane %v1827, 4
        %v1830 = vshll.u32 %v1633, 16
        %v1832 = vrot.slane %v1830, 5
        %v1833 = vsel %vm414, %v1828, %v1832
        %v1835 = vshrl.u32 %v1610, 16
        %v1837 = vrot.slane %v1835, 4
        %v1838 = vshll.u32 %v1610, 16
        %v1840 = vrot.slane %v1838, 5
        %v1841 = vor.u32 %v1837, %v1840
        %v1842 = vrot.slane %v1841, 4
        %v1844 = vshll.u32 %v1611, 16
        %v1846 = vrot.slane %v1844, 5
        %v1847 = vsel %vm414, %v1842, %v1846
        %v1848 = vshrl.u32 %v1611, 16
        %v1850 = vrot.slane %v1848, 4
        %v1851 = vor.u32 %v1850, %v1846
        %v1852 = vrot.slane %v1851, 4
        %v1854 = vshll.u32 %v1634, 16
        %v1856 = vrot.slane %v1854, 5
        %v1857 = vsel %vm414, %v1852, %v1856
        %v1859 = vshrl.u32 %v1612, 16
        %v1861 = vrot.slane %v1859, 4
        %v1862 = vshll.u32 %v1612, 16
        %v1864 = vrot.slane %v1862, 5
        %v1865 = vor.u32 %v1861, %v1864
        %v1866 = vrot.slane %v1865, 4
        %v1868 = vshll.u32 %v1613, 16
        %v1870 = vrot.slane %v1868, 5
        %v1871 = vsel %vm414, %v1866, %v1870
        %v1872 = vshrl.u32 %v1613, 16
        %v1874 = vrot.slane %v1872, 4
        %v1875 = vor.u32 %v1874, %v1870
        %v1876 = vrot.slane %v1875, 4
        %v1878 = vshll.u32 %v1635, 16
        %v1880 = vrot.slane %v1878, 5
        %v1881 = vsel %vm414, %v1876, %v1880
        %v1883 = vshrl.u32 %v1614, 16
        %v1885 = vrot.slane %v1883, 4
        %v1886 = vshll.u32 %v1614, 16
        %v1888 = vrot.slane %v1886, 5
        %v1889 = vor.u32 %v1885, %v1888
        %v1890 = vrot.slane %v1889, 4
        %v1892 = vshll.u32 %v1615, 16
        %v1894 = vrot.slane %v1892, 5
        %v1895 = vsel %vm414, %v1890, %v1894
        %v1896 = vshrl.u32 %v1615, 16
        %v1898 = vrot.slane %v1896, 4
        %v1899 = vor.u32 %v1898, %v1894
        %v1900 = vrot.slane %v1899, 4
        %v1902 = vshll.u32 %v1636, 16
        %v1904 = vrot.slane %v1902, 5
        %v1905 = vsel %vm414, %v1900, %v1904
        %v1907 = vshrl.u32 %v1616, 16
        %v1909 = vrot.slane %v1907, 4
        %v1910 = vshll.u32 %v1616, 16
        %v1912 = vrot.slane %v1910, 5
        %v1913 = vor.u32 %v1909, %v1912
        %v1914 = vrot.slane %v1913, 4
        %v1916 = vshll.u32 %v1617, 16
        %v1918 = vrot.slane %v1916, 5
        %v1919 = vsel %vm414, %v1914, %v1918
        %v1920 = vshrl.u32 %v1617, 16
        %v1922 = vrot.slane %v1920, 4
        %v1923 = vor.u32 %v1922, %v1918
        %v1924 = vrot.slane %v1923, 4
        %v1926 = vshll.u32 %v1637, 16
        %v1928 = vrot.slane %v1926, 5
        %v1929 = vsel %vm414, %v1924, %v1928
        %v1931 = vshrl.u32 %v1618, 16
        %v1933 = vrot.slane %v1931, 4
        %v1934 = vshll.u32 %v1618, 16
        %v1936 = vrot.slane %v1934, 5
        %v1937 = vor.u32 %v1933, %v1936
        %v1938 = vrot.slane %v1937, 4
        %v1940 = vshll.u32 %v1619, 16
        %v1942 = vrot.slane %v1940, 5
        %v1943 = vsel %vm414, %v1938, %v1942
        %v1944 = vshrl.u32 %v1619, 16
        %v1946 = vrot.slane %v1944, 4
        %v1947 = vor.u32 %v1946, %v1942
        %v1948 = vrot.slane %v1947, 4
        %v1950 = vshll.u32 %v1638, 16
        %v1952 = vrot.slane %v1950, 5
        %v1953 = vsel %vm414, %v1948, %v1952
        %v1955 = vshrl.u32 %v1620, 16
        %v1957 = vrot.slane %v1955, 4
        %v1958 = vshll.u32 %v1620, 16
        %v1960 = vrot.slane %v1958, 5
        %v1961 = vor.u32 %v1957, %v1960
        %v1962 = vrot.slane %v1961, 4
        %v1964 = vshll.u32 %v1621, 16
        %v1966 = vrot.slane %v1964, 5
        %v1967 = vsel %vm414, %v1962, %v1966
        %v1968 = vshrl.u32 %v1621, 16
        %v1970 = vrot.slane %v1968, 4
        %v1971 = vor.u32 %v1970, %v1966
        %v1972 = vrot.slane %v1971, 4
        %v1974 = vshll.u32 %v1639, 16
        %v1976 = vrot.slane %v1974, 5
        %v1977 = vsel %vm414, %v1972, %v1976
        %v1979 = vshrl.u32 %v1622, 16
        %v1981 = vrot.slane %v1979, 4
        %v1982 = vshll.u32 %v1622, 16
        %v1984 = vrot.slane %v1982, 5
        %v1985 = vor.u32 %v1981, %v1984
        %v1986 = vrot.slane %v1985, 4
        %v1988 = vshll.u32 %v1623, 16
        %v1990 = vrot.slane %v1988, 5
        %v1991 = vsel %vm414, %v1986, %v1990
        %v1992 = vshrl.u32 %v1623, 16
        %v1994 = vrot.slane %v1992, 4
        %v1995 = vor.u32 %v1994, %v1990
        %v1996 = vrot.slane %v1995, 4
        %v1998 = vshll.u32 %v1640, 16
        %v2000 = vrot.slane %v1998, 5
        %v2001 = vsel %vm414, %v1996, %v2000
        %v2003 = vshrl.u32 %v1624, 16
        %v2005 = vrot.slane %v2003, 4
        %v2006 = vshll.u32 %v1624, 16
        %v2008 = vrot.slane %v2006, 5
        %v2009 = vor.u32 %v2005, %v2008
        %v2010 = vrot.slane %v2009, 4
        %v2012 = vshll.u32 %v1625, 16
        %v2014 = vrot.slane %v2012, 5
        %v2015 = vsel %vm414, %v2010, %v2014
        %v2016 = vshrl.u32 %v1625, 16
        %v2018 = vrot.slane %v2016, 4
        %v2019 = vor.u32 %v2018, %v2014
        %v2020 = vrot.slane %v2019, 4
        %v2022 = vshll.u32 %v1641, 16
        %v2024 = vrot.slane %v2022, 5
        %v2025 = vsel %vm414, %v2020, %v2024
        %v2026 = vld [vmem:[%s1593] sm:$0xe]
        %v2027 = vld [vmem:[%s1593 + $0xc] sm:$0xe]
        %v2028 = vld [vmem:[%s1593 + $0x18] sm:$0xe]
        %v2029 = vld [vmem:[%s1593 + $0x24] sm:$0xe]
        %v2030 = vld [vmem:[%s1593 + $0x30] sm:$0xe]
        %v2031 = vld [vmem:[%s1593 + $0x3c] sm:$0xe]
        %v2032 = vld [vmem:[%s1593 + $0x48] sm:$0xe]
        %v2033 = vld [vmem:[%s1593 + $0x54] sm:$0xe]
        %v2034 = vld [vmem:[%s1593 + $0x60] sm:$0xe]
        %v2035 = vld [vmem:[%s1593 + $0x6c] sm:$0xe]
        %v2036 = vld [vmem:[%s1593 + $0x78] sm:$0xe]
        %v2037 = vld [vmem:[%s1593 + $0x84] sm:$0xe]
        %v2038 = vld [vmem:[%s1593 + $0x90] sm:$0xe]
        %v2039 = vld [vmem:[%s1593 + $0x9c] sm:$0xe]
        %v2040 = vld [vmem:[%s1593 + $0xa8] sm:$0xe]
        %v2041 = vld [vmem:[%s1593 + $0xb4] sm:$0xe]
        %v2090 = vrot.slane %v2026, 5
        %v2091 = vrot.slane %v2090, 4
        %v2092 = vrot.slane %v1595, 5
        %v2093 = vsel %vm865, %v2091, %v2092
        %v2094 = vrot.slane %v2092, 4
        %v2095 = vrot.slane %v1626, 5
        %v2096 = vsel %vm865, %v2094, %v2095
        %v2097 = vrot.slane %v2027, 5
        %v2098 = vrot.slane %v2097, 4
        %v2099 = vrot.slane %v1597, 5
        %v2100 = vsel %vm865, %v2098, %v2099
        %v2101 = vrot.slane %v2099, 4
        %v2102 = vrot.slane %v1627, 5
        %v2103 = vsel %vm865, %v2101, %v2102
        %v2104 = vrot.slane %v2028, 5
        %v2105 = vrot.slane %v2104, 4
        %v2106 = vrot.slane %v1599, 5
        %v2107 = vsel %vm865, %v2105, %v2106
        %v2108 = vrot.slane %v2106, 4
        %v2109 = vrot.slane %v1628, 5
        %v2110 = vsel %vm865, %v2108, %v2109
        %v2111 = vrot.slane %v2029, 5
        %v2112 = vrot.slane %v2111, 4
        %v2113 = vrot.slane %v1601, 5
        %v2114 = vsel %vm865, %v2112, %v2113
        %v2115 = vrot.slane %v2113, 4
        %v2116 = vrot.slane %v1629, 5
        %v2117 = vsel %vm865, %v2115, %v2116
        %v2118 = vrot.slane %v2030, 5
        %v2119 = vrot.slane %v2118, 4
        %v2120 = vrot.slane %v1603, 5
        %v2121 = vsel %vm865, %v2119, %v2120
        %v2122 = vrot.slane %v2120, 4
        %v2123 = vrot.slane %v1630, 5
        %v2124 = vsel %vm865, %v2122, %v2123
        %v2125 = vrot.slane %v2031, 5
        %v2126 = vrot.slane %v2125, 4
        %v2127 = vrot.slane %v1605, 5
        %v2128 = vsel %vm865, %v2126, %v2127
        %v2129 = vrot.slane %v2127, 4
        %v2130 = vrot.slane %v1631, 5
        %v2131 = vsel %vm865, %v2129, %v2130
        %v2132 = vrot.slane %v2032, 5
        %v2133 = vrot.slane %v2132, 4
        %v2134 = vrot.slane %v1607, 5
        %v2135 = vsel %vm865, %v2133, %v2134
        %v2136 = vrot.slane %v2134, 4
        %v2137 = vrot.slane %v1632, 5
        %v2138 = vsel %vm865, %v2136, %v2137
        %v2139 = vrot.slane %v2033, 5
        %v2140 = vrot.slane %v2139, 4
        %v2141 = vrot.slane %v1609, 5
        %v2142 = vsel %vm865, %v2140, %v2141
        %v2143 = vrot.slane %v2141, 4
        %v2144 = vrot.slane %v1633, 5
        %v2145 = vsel %vm865, %v2143, %v2144
        %v2146 = vrot.slane %v2034, 5
        %v2147 = vrot.slane %v2146, 4
        %v2148 = vrot.slane %v1611, 5
        %v2149 = vsel %vm865, %v2147, %v2148
        %v2150 = vrot.slane %v2148, 4
        %v2151 = vrot.slane %v1634, 5
        %v2152 = vsel %vm865, %v2150, %v2151
        %v2153 = vrot.slane %v2035, 5
        %v2154 = vrot.slane %v2153, 4
        %v2155 = vrot.slane %v1613, 5
        %v2156 = vsel %vm865, %v2154, %v2155
        %v2157 = vrot.slane %v2155, 4
        %v2158 = vrot.slane %v1635, 5
        %v2159 = vsel %vm865, %v2157, %v2158
        %v2160 = vrot.slane %v2036, 5
        %v2161 = vrot.slane %v2160, 4
        %v2162 = vrot.slane %v1615, 5
        %v2163 = vsel %vm865, %v2161, %v2162
        %v2164 = vrot.slane %v2162, 4
        %v2165 = vrot.slane %v1636, 5
        %v2166 = vsel %vm865, %v2164, %v2165
        %v2167 = vrot.slane %v2037, 5
        %v2168 = vrot.slane %v2167, 4
        %v2169 = vrot.slane %v1617, 5
        %v2170 = vsel %vm865, %v2168, %v2169
        %v2171 = vrot.slane %v2169, 4
        %v2172 = vrot.slane %v1637, 5
        %v2173 = vsel %vm865, %v2171, %v2172
        %v2174 = vrot.slane %v2038, 5
        %v2175 = vrot.slane %v2174, 4
        %v2176 = vrot.slane %v1619, 5
        %v2177 = vsel %vm865, %v2175, %v2176
        %v2178 = vrot.slane %v2176, 4
        %v2179 = vrot.slane %v1638, 5
        %v2180 = vsel %vm865, %v2178, %v2179
        %v2181 = vrot.slane %v2039, 5
        %v2182 = vrot.slane %v2181, 4
        %v2183 = vrot.slane %v1621, 5
        %v2184 = vsel %vm865, %v2182, %v2183
        %v2185 = vrot.slane %v2183, 4
        %v2186 = vrot.slane %v1639, 5
        %v2187 = vsel %vm865, %v2185, %v2186
        %v2188 = vrot.slane %v2040, 5
        %v2189 = vrot.slane %v2188, 4
        %v2190 = vrot.slane %v1623, 5
        %v2191 = vsel %vm865, %v2189, %v2190
        %v2192 = vrot.slane %v2190, 4
        %v2193 = vrot.slane %v1640, 5
        %v2194 = vsel %vm865, %v2192, %v2193
        %v2195 = vrot.slane %v2041, 5
        %v2196 = vrot.slane %v2195, 4
        %v2197 = vrot.slane %v1625, 5
        %v2198 = vsel %vm865, %v2196, %v2197
        %v2199 = vrot.slane %v2197, 4
        %v2200 = vrot.slane %v1641, 5
        %v2201 = vsel %vm865, %v2199, %v2200
        %v2218 = vunpack.c.l.b16 %v364
        %v2219 = vunpack.c.l.b16 %v365
        %v2220 = vunpack.c.l.b16 %v366
        %v2221 = vunpack.c.l.b16 %v367
        %v2222 = vunpack.c.l.b16 %v368
        %v2223 = vunpack.c.l.b16 %v369
        %v2224 = vunpack.c.l.b16 %v370
        %v2225 = vunpack.c.l.b16 %v371
        %v2226 = vunpack.c.l.b16 %v372
        %v2227 = vunpack.c.l.b16 %v373
        %v2228 = vunpack.c.l.b16 %v374
        %v2229 = vunpack.c.l.b16 %v375
        %v2230 = vunpack.c.l.b16 %v376
        %v2231 = vunpack.c.l.b16 %v377
        %v2232 = vunpack.c.l.b16 %v378
        %v2233 = vunpack.c.l.b16 %v379
        %v2234 = vunpack.c.l.b16 %v380
        %v2235 = vunpack.c.l.b16 %v381
        %v2236 = vunpack.c.l.b16 %v382
        %v2237 = vunpack.c.l.b16 %v383
        %v2238 = vunpack.c.l.b16 %v384
        %v2239 = vunpack.c.l.b16 %v385
        %v2240 = vunpack.c.l.b16 %v386
        %v2241 = vunpack.c.l.b16 %v387
        %v2242 = vunpack.c.l.b16 %v388
        %v2243 = vunpack.c.l.b16 %v389
        %v2244 = vunpack.c.l.b16 %v390
        %v2245 = vunpack.c.l.b16 %v391
        %v2246 = vunpack.c.l.b16 %v392
        %v2247 = vunpack.c.l.b16 %v393
        %v2248 = vunpack.c.l.b16 %v394
        %v2249 = vunpack.c.l.b16 %v395
        %v2250 = vpack.c.b16 %v2219, %v2218
        %v2251 = vpack.c.b16 %v2221, %v2220
        %v2252 = vpack.c.b16 %v2223, %v2222
        %v2253 = vpack.c.b16 %v2225, %v2224
        %v2254 = vpack.c.b16 %v2227, %v2226
        %v2255 = vpack.c.b16 %v2229, %v2228
        %v2256 = vpack.c.b16 %v2231, %v2230
        %v2257 = vpack.c.b16 %v2233, %v2232
        %v2258 = vpack.c.b16 %v2235, %v2234
        %v2259 = vpack.c.b16 %v2237, %v2236
        %v2260 = vpack.c.b16 %v2239, %v2238
        %v2261 = vpack.c.b16 %v2241, %v2240
        %v2262 = vpack.c.b16 %v2243, %v2242
        %v2263 = vpack.c.b16 %v2245, %v2244
        %v2264 = vpack.c.b16 %v2247, %v2246
        %v2265 = vpack.c.b16 %v2249, %v2248
        %v2266 = vunpack.c.l.b16 %v428
        %v2267 = vunpack.c.l.b16 %v438
        %v2268 = vunpack.c.l.b16 %v452
        %v2269 = vunpack.c.l.b16 %v462
        %v2270 = vunpack.c.l.b16 %v476
        %v2271 = vunpack.c.l.b16 %v486
        %v2272 = vunpack.c.l.b16 %v500
        %v2273 = vunpack.c.l.b16 %v510
        %v2274 = vunpack.c.l.b16 %v524
        %v2275 = vunpack.c.l.b16 %v534
        %v2276 = vunpack.c.l.b16 %v548
        %v2277 = vunpack.c.l.b16 %v558
        %v2278 = vunpack.c.l.b16 %v572
        %v2279 = vunpack.c.l.b16 %v582
        %v2280 = vunpack.c.l.b16 %v596
        %v2281 = vunpack.c.l.b16 %v606
        %v2282 = vunpack.c.l.b16 %v620
        %v2283 = vunpack.c.l.b16 %v630
        %v2284 = vunpack.c.l.b16 %v644
        %v2285 = vunpack.c.l.b16 %v654
        %v2286 = vunpack.c.l.b16 %v668
        %v2287 = vunpack.c.l.b16 %v678
        %v2288 = vunpack.c.l.b16 %v692
        %v2289 = vunpack.c.l.b16 %v702
        %v2290 = vunpack.c.l.b16 %v716
        %v2291 = vunpack.c.l.b16 %v726
        %v2292 = vunpack.c.l.b16 %v740
        %v2293 = vunpack.c.l.b16 %v750
        %v2294 = vunpack.c.l.b16 %v764
        %v2295 = vunpack.c.l.b16 %v774
        %v2296 = vunpack.c.l.b16 %v788
        %v2297 = vunpack.c.l.b16 %v798
        %v2298 = vpack.c.b16 %v2267, %v2266
        %v2299 = vpack.c.b16 %v2269, %v2268
        %v2300 = vpack.c.b16 %v2271, %v2270
        %v2301 = vpack.c.b16 %v2273, %v2272
        %v2302 = vpack.c.b16 %v2275, %v2274
        %v2303 = vpack.c.b16 %v2277, %v2276
        %v2304 = vpack.c.b16 %v2279, %v2278
        %v2305 = vpack.c.b16 %v2281, %v2280
        %v2306 = vpack.c.b16 %v2283, %v2282
        %v2307 = vpack.c.b16 %v2285, %v2284
        %v2308 = vpack.c.b16 %v2287, %v2286
        %v2309 = vpack.c.b16 %v2289, %v2288
        %v2310 = vpack.c.b16 %v2291, %v2290
        %v2311 = vpack.c.b16 %v2293, %v2292
        %v2312 = vpack.c.b16 %v2295, %v2294
        %v2313 = vpack.c.b16 %v2297, %v2296
        %2314 = vrot.lane.b32.xlu0 %v2298, 4
        %v2315 = vpop.permute.xlu0 %2314
        %2316 = vrot.lane.b32.xlu0 %v2299, 4
        %v2317 = vpop.permute.xlu0 %2316
        %2318 = vrot.lane.b32.xlu0 %v2300, 4
        %v2319 = vpop.permute.xlu0 %2318
        %2320 = vrot.lane.b32.xlu0 %v2301, 4
        %v2321 = vpop.permute.xlu0 %2320
        %2322 = vrot.lane.b32.xlu0 %v2302, 4
        %v2323 = vpop.permute.xlu0 %2322
        %2324 = vrot.lane.b32.xlu0 %v2303, 4
        %v2325 = vpop.permute.xlu0 %2324
        %2326 = vrot.lane.b32.xlu0 %v2304, 4
        %v2327 = vpop.permute.xlu0 %2326
        %2328 = vrot.lane.b32.xlu0 %v2305, 4
        %v2329 = vpop.permute.xlu0 %2328
        %2330 = vrot.lane.b32.xlu0 %v2306, 4
        %v2331 = vpop.permute.xlu0 %2330
        %2332 = vrot.lane.b32.xlu0 %v2307, 4
        %v2333 = vpop.permute.xlu0 %2332
        %2334 = vrot.lane.b32.xlu0 %v2308, 4
        %v2335 = vpop.permute.xlu0 %2334
        %2336 = vrot.lane.b32.xlu0 %v2309, 4
        %v2337 = vpop.permute.xlu0 %2336
        %2338 = vrot.lane.b32.xlu0 %v2310, 4
        %v2339 = vpop.permute.xlu0 %2338
        %2340 = vrot.lane.b32.xlu0 %v2311, 4
        %v2341 = vpop.permute.xlu0 %2340
        %2342 = vrot.lane.b32.xlu0 %v2312, 4
        %v2343 = vpop.permute.xlu0 %2342
        %2344 = vrot.lane.b32.xlu0 %v2313, 4
        %v2345 = vpop.permute.xlu0 %2344
        %v2346 = vunpack.c.l.b16 %v869
        %v2347 = vunpack.c.l.b16 %v872
        %v2348 = vunpack.c.l.b16 %v876
        %v2349 = vunpack.c.l.b16 %v879
        %v2350 = vunpack.c.l.b16 %v883
        %v2351 = vunpack.c.l.b16 %v886
        %v2352 = vunpack.c.l.b16 %v890
        %v2353 = vunpack.c.l.b16 %v893
        %v2354 = vunpack.c.l.b16 %v897
        %v2355 = vunpack.c.l.b16 %v900
        %v2356 = vunpack.c.l.b16 %v904
        %v2357 = vunpack.c.l.b16 %v907
        %v2358 = vunpack.c.l.b16 %v911
        %v2359 = vunpack.c.l.b16 %v914
        %v2360 = vunpack.c.l.b16 %v918
        %v2361 = vunpack.c.l.b16 %v921
        %v2362 = vunpack.c.l.b16 %v925
        %v2363 = vunpack.c.l.b16 %v928
        %v2364 = vunpack.c.l.b16 %v932
        %v2365 = vunpack.c.l.b16 %v935
        %v2366 = vunpack.c.l.b16 %v939
        %v2367 = vunpack.c.l.b16 %v942
        %v2368 = vunpack.c.l.b16 %v946
        %v2369 = vunpack.c.l.b16 %v949
        %v2370 = vunpack.c.l.b16 %v953
        %v2371 = vunpack.c.l.b16 %v956
        %v2372 = vunpack.c.l.b16 %v960
        %v2373 = vunpack.c.l.b16 %v963
        %v2374 = vunpack.c.l.b16 %v967
        %v2375 = vunpack.c.l.b16 %v970
        %v2376 = vunpack.c.l.b16 %v974
        %v2377 = vunpack.c.l.b16 %v977
        %v2378 = vpack.c.b16 %v2347, %v2346
        %v2379 = vpack.c.b16 %v2349, %v2348
        %v2380 = vpack.c.b16 %v2351, %v2350
        %v2381 = vpack.c.b16 %v2353, %v2352
        %v2382 = vpack.c.b16 %v2355, %v2354
        %v2383 = vpack.c.b16 %v2357, %v2356
        %v2384 = vpack.c.b16 %v2359, %v2358
        %v2385 = vpack.c.b16 %v2361, %v2360
        %v2386 = vpack.c.b16 %v2363, %v2362
        %v2387 = vpack.c.b16 %v2365, %v2364
        %v2388 = vpack.c.b16 %v2367, %v2366
        %v2389 = vpack.c.b16 %v2369, %v2368
        %v2390 = vpack.c.b16 %v2371, %v2370
        %v2391 = vpack.c.b16 %v2373, %v2372
        %v2392 = vpack.c.b16 %v2375, %v2374
        %v2393 = vpack.c.b16 %v2377, %v2376
        %2394 = vrot.lane.b32.xlu0 %v2378, 8
        %v2395 = vpop.permute.xlu0 %2394
        %2396 = vrot.lane.b32.xlu0 %v2379, 8
        %v2397 = vpop.permute.xlu0 %2396
        %2398 = vrot.lane.b32.xlu0 %v2380, 8
        %v2399 = vpop.permute.xlu0 %2398
        %2400 = vrot.lane.b32.xlu0 %v2381, 8
        %v2401 = vpop.permute.xlu0 %2400
        %2402 = vrot.lane.b32.xlu0 %v2382, 8
        %v2403 = vpop.permute.xlu0 %2402
        %2404 = vrot.lane.b32.xlu0 %v2383, 8
        %v2405 = vpop.permute.xlu0 %2404
        %2406 = vrot.lane.b32.xlu0 %v2384, 8
        %v2407 = vpop.permute.xlu0 %2406
        %2408 = vrot.lane.b32.xlu0 %v2385, 8
        %v2409 = vpop.permute.xlu0 %2408
        %2410 = vrot.lane.b32.xlu0 %v2386, 8
        %v2411 = vpop.permute.xlu0 %2410
        %2412 = vrot.lane.b32.xlu0 %v2387, 8
        %v2413 = vpop.permute.xlu0 %2412
        %2414 = vrot.lane.b32.xlu0 %v2388, 8
        %v2415 = vpop.permute.xlu0 %2414
        %2416 = vrot.lane.b32.xlu0 %v2389, 8
        %v2417 = vpop.permute.xlu0 %2416
        %2418 = vrot.lane.b32.xlu0 %v2390, 8
        %v2419 = vpop.permute.xlu0 %2418
        %2420 = vrot.lane.b32.xlu0 %v2391, 8
        %v2421 = vpop.permute.xlu0 %2420
        %2422 = vrot.lane.b32.xlu0 %v2392, 8
        %v2423 = vpop.permute.xlu0 %2422
        %2424 = vrot.lane.b32.xlu0 %v2393, 8
        %v2425 = vpop.permute.xlu0 %2424
        %v2442 = vunpack.c.l.b16 %v982
        %v2443 = vunpack.c.l.b16 %v983
        %v2444 = vunpack.c.l.b16 %v984
        %v2445 = vunpack.c.l.b16 %v985
        %v2446 = vunpack.c.l.b16 %v986
        %v2447 = vunpack.c.l.b16 %v987
        %v2448 = vunpack.c.l.b16 %v988
        %v2449 = vunpack.c.l.b16 %v989
        %v2450 = vunpack.c.l.b16 %v990
        %v2451 = vunpack.c.l.b16 %v991
        %v2452 = vunpack.c.l.b16 %v992
        %v2453 = vunpack.c.l.b16 %v993
        %v2454 = vunpack.c.l.b16 %v994
        %v2455 = vunpack.c.l.b16 %v995
        %v2456 = vunpack.c.l.b16 %v996
        %v2457 = vunpack.c.l.b16 %v997
        %v2458 = vunpack.c.l.b16 %v998
        %v2459 = vunpack.c.l.b16 %v999
        %v2460 = vunpack.c.l.b16 %v1000
        %v2461 = vunpack.c.l.b16 %v1001
        %v2462 = vunpack.c.l.b16 %v1002
        %v2463 = vunpack.c.l.b16 %v1003
        %v2464 = vunpack.c.l.b16 %v1004
        %v2465 = vunpack.c.l.b16 %v1005
        %v2466 = vunpack.c.l.b16 %v1006
        %v2467 = vunpack.c.l.b16 %v1007
        %v2468 = vunpack.c.l.b16 %v1008
        %v2469 = vunpack.c.l.b16 %v1009
        %v2470 = vunpack.c.l.b16 %v1010
        %v2471 = vunpack.c.l.b16 %v1011
        %v2472 = vunpack.c.l.b16 %v1012
        %v2473 = vunpack.c.l.b16 %v1013
        %v2474 = vpack.c.b16 %v2443, %v2442
        %v2475 = vpack.c.b16 %v2445, %v2444
        %v2476 = vpack.c.b16 %v2447, %v2446
        %v2477 = vpack.c.b16 %v2449, %v2448
        %v2478 = vpack.c.b16 %v2451, %v2450
        %v2479 = vpack.c.b16 %v2453, %v2452
        %v2480 = vpack.c.b16 %v2455, %v2454
        %v2481 = vpack.c.b16 %v2457, %v2456
        %v2482 = vpack.c.b16 %v2459, %v2458
        %v2483 = vpack.c.b16 %v2461, %v2460
        %v2484 = vpack.c.b16 %v2463, %v2462
        %v2485 = vpack.c.b16 %v2465, %v2464
        %v2486 = vpack.c.b16 %v2467, %v2466
        %v2487 = vpack.c.b16 %v2469, %v2468
        %v2488 = vpack.c.b16 %v2471, %v2470
        %v2489 = vpack.c.b16 %v2473, %v2472
        %2490 = vrot.lane.b32.xlu0 %v2474, 12
        %v2491 = vpop.permute.xlu0 %2490
        %2492 = vrot.lane.b32.xlu0 %v2475, 12
        %v2493 = vpop.permute.xlu0 %2492
        %2494 = vrot.lane.b32.xlu0 %v2476, 12
        %v2495 = vpop.permute.xlu0 %2494
        %2496 = vrot.lane.b32.xlu0 %v2477, 12
        %v2497 = vpop.permute.xlu0 %2496
        %2498 = vrot.lane.b32.xlu0 %v2478, 12
        %v2499 = vpop.permute.xlu0 %2498
        %2500 = vrot.lane.b32.xlu0 %v2479, 12
        %v2501 = vpop.permute.xlu0 %2500
        %2502 = vrot.lane.b32.xlu0 %v2480, 12
        %v2503 = vpop.permute.xlu0 %2502
        %2504 = vrot.lane.b32.xlu0 %v2481, 12
        %v2505 = vpop.permute.xlu0 %2504
        %2506 = vrot.lane.b32.xlu0 %v2482, 12
        %v2507 = vpop.permute.xlu0 %2506
        %2508 = vrot.lane.b32.xlu0 %v2483, 12
        %v2509 = vpop.permute.xlu0 %2508
        %2510 = vrot.lane.b32.xlu0 %v2484, 12
        %v2511 = vpop.permute.xlu0 %2510
        %2512 = vrot.lane.b32.xlu0 %v2485, 12
        %v2513 = vpop.permute.xlu0 %2512
        %2514 = vrot.lane.b32.xlu0 %v2486, 12
        %v2515 = vpop.permute.xlu0 %2514
        %2516 = vrot.lane.b32.xlu0 %v2487, 12
        %v2517 = vpop.permute.xlu0 %2516
        %2518 = vrot.lane.b32.xlu0 %v2488, 12
        %v2519 = vpop.permute.xlu0 %2518
        %2520 = vrot.lane.b32.xlu0 %v2489, 12
        %v2521 = vpop.permute.xlu0 %2520
        %v2522 = vunpack.c.l.b16 %v1043
        %v2523 = vunpack.c.l.b16 %v1053
        %v2524 = vunpack.c.l.b16 %v1067
        %v2525 = vunpack.c.l.b16 %v1077
        %v2526 = vunpack.c.l.b16 %v1091
        %v2527 = vunpack.c.l.b16 %v1101
        %v2528 = vunpack.c.l.b16 %v1115
        %v2529 = vunpack.c.l.b16 %v1125
        %v2530 = vunpack.c.l.b16 %v1139
        %v2531 = vunpack.c.l.b16 %v1149
        %v2532 = vunpack.c.l.b16 %v1163
        %v2533 = vunpack.c.l.b16 %v1173
        %v2534 = vunpack.c.l.b16 %v1187
        %v2535 = vunpack.c.l.b16 %v1197
        %v2536 = vunpack.c.l.b16 %v1211
        %v2537 = vunpack.c.l.b16 %v1221
        %v2538 = vunpack.c.l.b16 %v1235
        %v2539 = vunpack.c.l.b16 %v1245
        %v2540 = vunpack.c.l.b16 %v1259
        %v2541 = vunpack.c.l.b16 %v1269
        %v2542 = vunpack.c.l.b16 %v1283
        %v2543 = vunpack.c.l.b16 %v1293
        %v2544 = vunpack.c.l.b16 %v1307
        %v2545 = vunpack.c.l.b16 %v1317
        %v2546 = vunpack.c.l.b16 %v1331
        %v2547 = vunpack.c.l.b16 %v1341
        %v2548 = vunpack.c.l.b16 %v1355
        %v2549 = vunpack.c.l.b16 %v1365
        %v2550 = vunpack.c.l.b16 %v1379
        %v2551 = vunpack.c.l.b16 %v1389
        %v2552 = vunpack.c.l.b16 %v1403
        %v2553 = vunpack.c.l.b16 %v1413
        %v2554 = vpack.c.b16 %v2523, %v2522
        %v2555 = vpack.c.b16 %v2525, %v2524
        %v2556 = vpack.c.b16 %v2527, %v2526
        %v2557 = vpack.c.b16 %v2529, %v2528
        %v2558 = vpack.c.b16 %v2531, %v2530
        %v2559 = vpack.c.b16 %v2533, %v2532
        %v2560 = vpack.c.b16 %v2535, %v2534
        %v2561 = vpack.c.b16 %v2537, %v2536
        %v2562 = vpack.c.b16 %v2539, %v2538
        %v2563 = vpack.c.b16 %v2541, %v2540
        %v2564 = vpack.c.b16 %v2543, %v2542
        %v2565 = vpack.c.b16 %v2545, %v2544
        %v2566 = vpack.c.b16 %v2547, %v2546
        %v2567 = vpack.c.b16 %v2549, %v2548
        %v2568 = vpack.c.b16 %v2551, %v2550
        %v2569 = vpack.c.b16 %v2553, %v2552
        %2570 = vrot.lane.b32.xlu0 %v2554, 16
        %v2571 = vpop.permute.xlu0 %2570
        %2572 = vrot.lane.b32.xlu0 %v2555, 16
        %v2573 = vpop.permute.xlu0 %2572
        %2574 = vrot.lane.b32.xlu0 %v2556, 16
        %v2575 = vpop.permute.xlu0 %2574
        %2576 = vrot.lane.b32.xlu0 %v2557, 16
        %v2577 = vpop.permute.xlu0 %2576
        %2578 = vrot.lane.b32.xlu0 %v2558, 16
        %v2579 = vpop.permute.xlu0 %2578
        %2580 = vrot.lane.b32.xlu0 %v2559, 16
        %v2581 = vpop.permute.xlu0 %2580
        %2582 = vrot.lane.b32.xlu0 %v2560, 16
        %v2583 = vpop.permute.xlu0 %2582
        %2584 = vrot.lane.b32.xlu0 %v2561, 16
        %v2585 = vpop.permute.xlu0 %2584
        %2586 = vrot.lane.b32.xlu0 %v2562, 16
        %v2587 = vpop.permute.xlu0 %2586
        %2588 = vrot.lane.b32.xlu0 %v2563, 16
        %v2589 = vpop.permute.xlu0 %2588
        %2590 = vrot.lane.b32.xlu0 %v2564, 16
        %v2591 = vpop.permute.xlu0 %2590
        %2592 = vrot.lane.b32.xlu0 %v2565, 16
        %v2593 = vpop.permute.xlu0 %2592
        %2594 = vrot.lane.b32.xlu0 %v2566, 16
        %v2595 = vpop.permute.xlu0 %2594
        %2596 = vrot.lane.b32.xlu0 %v2567, 16
        %v2597 = vpop.permute.xlu0 %2596
        %2598 = vrot.lane.b32.xlu0 %v2568, 16
        %v2599 = vpop.permute.xlu0 %2598
        %2600 = vrot.lane.b32.xlu0 %v2569, 16
        %v2601 = vpop.permute.xlu0 %2600
        %v2602 = vunpack.c.l.b16 %v1481
        %v2603 = vunpack.c.l.b16 %v1484
        %v2604 = vunpack.c.l.b16 %v1488
        %v2605 = vunpack.c.l.b16 %v1491
        %v2606 = vunpack.c.l.b16 %v1495
        %v2607 = vunpack.c.l.b16 %v1498
        %v2608 = vunpack.c.l.b16 %v1502
        %v2609 = vunpack.c.l.b16 %v1505
        %v2610 = vunpack.c.l.b16 %v1509
        %v2611 = vunpack.c.l.b16 %v1512
        %v2612 = vunpack.c.l.b16 %v1516
        %v2613 = vunpack.c.l.b16 %v1519
        %v2614 = vunpack.c.l.b16 %v1523
        %v2615 = vunpack.c.l.b16 %v1526
        %v2616 = vunpack.c.l.b16 %v1530
        %v2617 = vunpack.c.l.b16 %v1533
        %v2618 = vunpack.c.l.b16 %v1537
        %v2619 = vunpack.c.l.b16 %v1540
        %v2620 = vunpack.c.l.b16 %v1544
        %v2621 = vunpack.c.l.b16 %v1547
        %v2622 = vunpack.c.l.b16 %v1551
        %v2623 = vunpack.c.l.b16 %v1554
        %v2624 = vunpack.c.l.b16 %v1558
        %v2625 = vunpack.c.l.b16 %v1561
        %v2626 = vunpack.c.l.b16 %v1565
        %v2627 = vunpack.c.l.b16 %v1568
        %v2628 = vunpack.c.l.b16 %v1572
        %v2629 = vunpack.c.l.b16 %v1575
        %v2630 = vunpack.c.l.b16 %v1579
        %v2631 = vunpack.c.l.b16 %v1582
        %v2632 = vunpack.c.l.b16 %v1586
        %v2633 = vunpack.c.l.b16 %v1589
        %v2634 = vpack.c.b16 %v2603, %v2602
        %v2635 = vpack.c.b16 %v2605, %v2604
        %v2636 = vpack.c.b16 %v2607, %v2606
        %v2637 = vpack.c.b16 %v2609, %v2608
        %v2638 = vpack.c.b16 %v2611, %v2610
        %v2639 = vpack.c.b16 %v2613, %v2612
        %v2640 = vpack.c.b16 %v2615, %v2614
        %v2641 = vpack.c.b16 %v2617, %v2616
        %v2642 = vpack.c.b16 %v2619, %v2618
        %v2643 = vpack.c.b16 %v2621, %v2620
        %v2644 = vpack.c.b16 %v2623, %v2622
        %v2645 = vpack.c.b16 %v2625, %v2624
        %v2646 = vpack.c.b16 %v2627, %v2626
        %v2647 = vpack.c.b16 %v2629, %v2628
        %v2648 = vpack.c.b16 %v2631, %v2630
        %v2649 = vpack.c.b16 %v2633, %v2632
        %2650 = vrot.lane.b32.xlu0 %v2634, 20
        %v2651 = vpop.permute.xlu0 %2650
        %2652 = vrot.lane.b32.xlu0 %v2635, 20
        %v2653 = vpop.permute.xlu0 %2652
        %2654 = vrot.lane.b32.xlu0 %v2636, 20
        %v2655 = vpop.permute.xlu0 %2654
        %2656 = vrot.lane.b32.xlu0 %v2637, 20
        %v2657 = vpop.permute.xlu0 %2656
        %2658 = vrot.lane.b32.xlu0 %v2638, 20
        %v2659 = vpop.permute.xlu0 %2658
        %2660 = vrot.lane.b32.xlu0 %v2639, 20
        %v2661 = vpop.permute.xlu0 %2660
        %2662 = vrot.lane.b32.xlu0 %v2640, 20
        %v2663 = vpop.permute.xlu0 %2662
        %2664 = vrot.lane.b32.xlu0 %v2641, 20
        %v2665 = vpop.permute.xlu0 %2664
        %2666 = vrot.lane.b32.xlu0 %v2642, 20
        %v2667 = vpop.permute.xlu0 %2666
        %2668 = vrot.lane.b32.xlu0 %v2643, 20
        %v2669 = vpop.permute.xlu0 %2668
        %2670 = vrot.lane.b32.xlu0 %v2644, 20
        %v2671 = vpop.permute.xlu0 %2670
        %2672 = vrot.lane.b32.xlu0 %v2645, 20
        %v2673 = vpop.permute.xlu0 %2672
        %2674 = vrot.lane.b32.xlu0 %v2646, 20
        %v2675 = vpop.permute.xlu0 %2674
        %2676 = vrot.lane.b32.xlu0 %v2647, 20
        %v2677 = vpop.permute.xlu0 %2676
        %2678 = vrot.lane.b32.xlu0 %v2648, 20
        %v2679 = vpop.permute.xlu0 %2678
        %2680 = vrot.lane.b32.xlu0 %v2649, 20
        %v2681 = vpop.permute.xlu0 %2680
        %v2698 = vunpack.c.l.b16 %v1594
        %v2699 = vunpack.c.l.b16 %v1595
        %v2700 = vunpack.c.l.b16 %v1596
        %v2701 = vunpack.c.l.b16 %v1597
        %v2702 = vunpack.c.l.b16 %v1598
        %v2703 = vunpack.c.l.b16 %v1599
        %v2704 = vunpack.c.l.b16 %v1600
        %v2705 = vunpack.c.l.b16 %v1601
        %v2706 = vunpack.c.l.b16 %v1602
        %v2707 = vunpack.c.l.b16 %v1603
        %v2708 = vunpack.c.l.b16 %v1604
        %v2709 = vunpack.c.l.b16 %v1605
        %v2710 = vunpack.c.l.b16 %v1606
        %v2711 = vunpack.c.l.b16 %v1607
        %v2712 = vunpack.c.l.b16 %v1608
        %v2713 = vunpack.c.l.b16 %v1609
        %v2714 = vunpack.c.l.b16 %v1610
        %v2715 = vunpack.c.l.b16 %v1611
        %v2716 = vunpack.c.l.b16 %v1612
        %v2717 = vunpack.c.l.b16 %v1613
        %v2718 = vunpack.c.l.b16 %v1614
        %v2719 = vunpack.c.l.b16 %v1615
        %v2720 = vunpack.c.l.b16 %v1616
        %v2721 = vunpack.c.l.b16 %v1617
        %v2722 = vunpack.c.l.b16 %v1618
        %v2723 = vunpack.c.l.b16 %v1619
        %v2724 = vunpack.c.l.b16 %v1620
        %v2725 = vunpack.c.l.b16 %v1621
        %v2726 = vunpack.c.l.b16 %v1622
        %v2727 = vunpack.c.l.b16 %v1623
        %v2728 = vunpack.c.l.b16 %v1624
        %v2729 = vunpack.c.l.b16 %v1625
        %v2730 = vpack.c.b16 %v2699, %v2698
        %v2731 = vpack.c.b16 %v2701, %v2700
        %v2732 = vpack.c.b16 %v2703, %v2702
        %v2733 = vpack.c.b16 %v2705, %v2704
        %v2734 = vpack.c.b16 %v2707, %v2706
        %v2735 = vpack.c.b16 %v2709, %v2708
        %v2736 = vpack.c.b16 %v2711, %v2710
        %v2737 = vpack.c.b16 %v2713, %v2712
        %v2738 = vpack.c.b16 %v2715, %v2714
        %v2739 = vpack.c.b16 %v2717, %v2716
        %v2740 = vpack.c.b16 %v2719, %v2718
        %v2741 = vpack.c.b16 %v2721, %v2720
        %v2742 = vpack.c.b16 %v2723, %v2722
        %v2743 = vpack.c.b16 %v2725, %v2724
        %v2744 = vpack.c.b16 %v2727, %v2726
        %v2745 = vpack.c.b16 %v2729, %v2728
        %2746 = vrot.lane.b32.xlu0 %v2730, 24
        %v2747 = vpop.permute.xlu0 %2746
        %2748 = vrot.lane.b32.xlu0 %v2731, 24
        %v2749 = vpop.permute.xlu0 %2748
        %2750 = vrot.lane.b32.xlu0 %v2732, 24
        %v2751 = vpop.permute.xlu0 %2750
        %2752 = vrot.lane.b32.xlu0 %v2733, 24
        %v2753 = vpop.permute.xlu0 %2752
        %2754 = vrot.lane.b32.xlu0 %v2734, 24
        %v2755 = vpop.permute.xlu0 %2754
        %2756 = vrot.lane.b32.xlu0 %v2735, 24
        %v2757 = vpop.permute.xlu0 %2756
        %2758 = vrot.lane.b32.xlu0 %v2736, 24
        %v2759 = vpop.permute.xlu0 %2758
        %2760 = vrot.lane.b32.xlu0 %v2737, 24
        %v2761 = vpop.permute.xlu0 %2760
        %2762 = vrot.lane.b32.xlu0 %v2738, 24
        %v2763 = vpop.permute.xlu0 %2762
        %2764 = vrot.lane.b32.xlu0 %v2739, 24
        %v2765 = vpop.permute.xlu0 %2764
        %2766 = vrot.lane.b32.xlu0 %v2740, 24
        %v2767 = vpop.permute.xlu0 %2766
        %2768 = vrot.lane.b32.xlu0 %v2741, 24
        %v2769 = vpop.permute.xlu0 %2768
        %2770 = vrot.lane.b32.xlu0 %v2742, 24
        %v2771 = vpop.permute.xlu0 %2770
        %2772 = vrot.lane.b32.xlu0 %v2743, 24
        %v2773 = vpop.permute.xlu0 %2772
        %2774 = vrot.lane.b32.xlu0 %v2744, 24
        %v2775 = vpop.permute.xlu0 %2774
        %2776 = vrot.lane.b32.xlu0 %v2745, 24
        %v2777 = vpop.permute.xlu0 %2776
        %v2778 = vunpack.c.l.b16 %v1655
        %v2779 = vunpack.c.l.b16 %v1665
        %v2780 = vunpack.c.l.b16 %v1679
        %v2781 = vunpack.c.l.b16 %v1689
        %v2782 = vunpack.c.l.b16 %v1703
        %v2783 = vunpack.c.l.b16 %v1713
        %v2784 = vunpack.c.l.b16 %v1727
        %v2785 = vunpack.c.l.b16 %v1737
        %v2786 = vunpack.c.l.b16 %v1751
        %v2787 = vunpack.c.l.b16 %v1761
        %v2788 = vunpack.c.l.b16 %v1775
        %v2789 = vunpack.c.l.b16 %v1785
        %v2790 = vunpack.c.l.b16 %v1799
        %v2791 = vunpack.c.l.b16 %v1809
        %v2792 = vunpack.c.l.b16 %v1823
        %v2793 = vunpack.c.l.b16 %v1833
        %v2794 = vunpack.c.l.b16 %v1847
        %v2795 = vunpack.c.l.b16 %v1857
        %v2796 = vunpack.c.l.b16 %v1871
        %v2797 = vunpack.c.l.b16 %v1881
        %v2798 = vunpack.c.l.b16 %v1895
        %v2799 = vunpack.c.l.b16 %v1905
        %v2800 = vunpack.c.l.b16 %v1919
        %v2801 = vunpack.c.l.b16 %v1929
        %v2802 = vunpack.c.l.b16 %v1943
        %v2803 = vunpack.c.l.b16 %v1953
        %v2804 = vunpack.c.l.b16 %v1967
        %v2805 = vunpack.c.l.b16 %v1977
        %v2806 = vunpack.c.l.b16 %v1991
        %v2807 = vunpack.c.l.b16 %v2001
        %v2808 = vunpack.c.l.b16 %v2015
        %v2809 = vunpack.c.l.b16 %v2025
        %v2810 = vpack.c.b16 %v2779, %v2778
        %v2811 = vpack.c.b16 %v2781, %v2780
        %v2812 = vpack.c.b16 %v2783, %v2782
        %v2813 = vpack.c.b16 %v2785, %v2784
        %v2814 = vpack.c.b16 %v2787, %v2786
        %v2815 = vpack.c.b16 %v2789, %v2788
        %v2816 = vpack.c.b16 %v2791, %v2790
        %v2817 = vpack.c.b16 %v2793, %v2792
        %v2818 = vpack.c.b16 %v2795, %v2794
        %v2819 = vpack.c.b16 %v2797, %v2796
        %v2820 = vpack.c.b16 %v2799, %v2798
        %v2821 = vpack.c.b16 %v2801, %v2800
        %v2822 = vpack.c.b16 %v2803, %v2802
        %v2823 = vpack.c.b16 %v2805, %v2804
        %v2824 = vpack.c.b16 %v2807, %v2806
        %v2825 = vpack.c.b16 %v2809, %v2808
        %2826 = vrot.lane.b32.xlu0 %v2810, 28
        %v2827 = vpop.permute.xlu0 %2826
        %2828 = vrot.lane.b32.xlu0 %v2811, 28
        %v2829 = vpop.permute.xlu0 %2828
        %2830 = vrot.lane.b32.xlu0 %v2812, 28
        %v2831 = vpop.permute.xlu0 %2830
        %2832 = vrot.lane.b32.xlu0 %v2813, 28
        %v2833 = vpop.permute.xlu0 %2832
        %2834 = vrot.lane.b32.xlu0 %v2814, 28
        %v2835 = vpop.permute.xlu0 %2834
        %2836 = vrot.lane.b32.xlu0 %v2815, 28
        %v2837 = vpop.permute.xlu0 %2836
        %2838 = vrot.lane.b32.xlu0 %v2816, 28
        %v2839 = vpop.permute.xlu0 %2838
        %2840 = vrot.lane.b32.xlu0 %v2817, 28
        %v2841 = vpop.permute.xlu0 %2840
        %2842 = vrot.lane.b32.xlu0 %v2818, 28
        %v2843 = vpop.permute.xlu0 %2842
        %2844 = vrot.lane.b32.xlu0 %v2819, 28
        %v2845 = vpop.permute.xlu0 %2844
        %2846 = vrot.lane.b32.xlu0 %v2820, 28
        %v2847 = vpop.permute.xlu0 %2846
        %2848 = vrot.lane.b32.xlu0 %v2821, 28
        %v2849 = vpop.permute.xlu0 %2848
        %2850 = vrot.lane.b32.xlu0 %v2822, 28
        %v2851 = vpop.permute.xlu0 %2850
        %2852 = vrot.lane.b32.xlu0 %v2823, 28
        %v2853 = vpop.permute.xlu0 %2852
        %2854 = vrot.lane.b32.xlu0 %v2824, 28
        %v2855 = vpop.permute.xlu0 %2854
        %2856 = vrot.lane.b32.xlu0 %v2825, 28
        %v2857 = vpop.permute.xlu0 %2856
        %v2858 = vunpack.c.l.b16 %v2093
        %v2859 = vunpack.c.l.b16 %v2096
        %v2860 = vunpack.c.l.b16 %v2100
        %v2861 = vunpack.c.l.b16 %v2103
        %v2862 = vunpack.c.l.b16 %v2107
        %v2863 = vunpack.c.l.b16 %v2110
        %v2864 = vunpack.c.l.b16 %v2114
        %v2865 = vunpack.c.l.b16 %v2117
        %v2866 = vunpack.c.l.b16 %v2121
        %v2867 = vunpack.c.l.b16 %v2124
        %v2868 = vunpack.c.l.b16 %v2128
        %v2869 = vunpack.c.l.b16 %v2131
        %v2870 = vunpack.c.l.b16 %v2135
        %v2871 = vunpack.c.l.b16 %v2138
        %v2872 = vunpack.c.l.b16 %v2142
        %v2873 = vunpack.c.l.b16 %v2145
        %v2874 = vunpack.c.l.b16 %v2149
        %v2875 = vunpack.c.l.b16 %v2152
        %v2876 = vunpack.c.l.b16 %v2156
        %v2877 = vunpack.c.l.b16 %v2159
        %v2878 = vunpack.c.l.b16 %v2163
        %v2879 = vunpack.c.l.b16 %v2166
        %v2880 = vunpack.c.l.b16 %v2170
        %v2881 = vunpack.c.l.b16 %v2173
        %v2882 = vunpack.c.l.b16 %v2177
        %v2883 = vunpack.c.l.b16 %v2180
        %v2884 = vunpack.c.l.b16 %v2184
        %v2885 = vunpack.c.l.b16 %v2187
        %v2886 = vunpack.c.l.b16 %v2191
        %v2887 = vunpack.c.l.b16 %v2194
        %v2888 = vunpack.c.l.b16 %v2198
        %v2889 = vunpack.c.l.b16 %v2201
        %v2890 = vpack.c.b16 %v2859, %v2858
        %v2891 = vpack.c.b16 %v2861, %v2860
        %v2892 = vpack.c.b16 %v2863, %v2862
        %v2893 = vpack.c.b16 %v2865, %v2864
        %v2894 = vpack.c.b16 %v2867, %v2866
        %v2895 = vpack.c.b16 %v2869, %v2868
        %v2896 = vpack.c.b16 %v2871, %v2870
        %v2897 = vpack.c.b16 %v2873, %v2872
        %v2898 = vpack.c.b16 %v2875, %v2874
        %v2899 = vpack.c.b16 %v2877, %v2876
        %v2900 = vpack.c.b16 %v2879, %v2878
        %v2901 = vpack.c.b16 %v2881, %v2880
        %v2902 = vpack.c.b16 %v2883, %v2882
        %v2903 = vpack.c.b16 %v2885, %v2884
        %v2904 = vpack.c.b16 %v2887, %v2886
        %v2905 = vpack.c.b16 %v2889, %v2888
        %2906 = vrot.lane.b32.xlu0 %v2890, 32
        %v2907 = vpop.permute.xlu0 %2906
        %2908 = vrot.lane.b32.xlu0 %v2891, 32
        %v2909 = vpop.permute.xlu0 %2908
        %2910 = vrot.lane.b32.xlu0 %v2892, 32
        %v2911 = vpop.permute.xlu0 %2910
        %2912 = vrot.lane.b32.xlu0 %v2893, 32
        %v2913 = vpop.permute.xlu0 %2912
        %2914 = vrot.lane.b32.xlu0 %v2894, 32
        %v2915 = vpop.permute.xlu0 %2914
        %2916 = vrot.lane.b32.xlu0 %v2895, 32
        %v2917 = vpop.permute.xlu0 %2916
        %2918 = vrot.lane.b32.xlu0 %v2896, 32
        %v2919 = vpop.permute.xlu0 %2918
        %2920 = vrot.lane.b32.xlu0 %v2897, 32
        %v2921 = vpop.permute.xlu0 %2920
        %2922 = vrot.lane.b32.xlu0 %v2898, 32
        %v2923 = vpop.permute.xlu0 %2922
        %2924 = vrot.lane.b32.xlu0 %v2899, 32
        %v2925 = vpop.permute.xlu0 %2924
        %2926 = vrot.lane.b32.xlu0 %v2900, 32
        %v2927 = vpop.permute.xlu0 %2926
        %2928 = vrot.lane.b32.xlu0 %v2901, 32
        %v2929 = vpop.permute.xlu0 %2928
        %2930 = vrot.lane.b32.xlu0 %v2902, 32
        %v2931 = vpop.permute.xlu0 %2930
        %2932 = vrot.lane.b32.xlu0 %v2903, 32
        %v2933 = vpop.permute.xlu0 %2932
        %2934 = vrot.lane.b32.xlu0 %v2904, 32
        %v2935 = vpop.permute.xlu0 %2934
        %2936 = vrot.lane.b32.xlu0 %v2905, 32
        %v2937 = vpop.permute.xlu0 %2936
        %vm2938 = vcmask 31744
        %v2941 = vsel %vm2938, %v2250, %v2315
        %v2944 = vsel %vm2938, %v2251, %v2317
        %v2947 = vsel %vm2938, %v2252, %v2319
        %v2950 = vsel %vm2938, %v2253, %v2321
        %v2953 = vsel %vm2938, %v2254, %v2323
        %v2956 = vsel %vm2938, %v2255, %v2325
        %v2959 = vsel %vm2938, %v2256, %v2327
        %v2962 = vsel %vm2938, %v2257, %v2329
        %v2965 = vsel %vm2938, %v2258, %v2331
        %v2968 = vsel %vm2938, %v2259, %v2333
        %v2971 = vsel %vm2938, %v2260, %v2335
        %v2974 = vsel %vm2938, %v2261, %v2337
        %v2977 = vsel %vm2938, %v2262, %v2339
        %v2980 = vsel %vm2938, %v2263, %v2341
        %v2983 = vsel %vm2938, %v2264, %v2343
        %v2986 = vsel %vm2938, %v2265, %v2345
        %vm2987 = vcmask 64512
        %v2989 = vsel %vm2987, %v2941, %v2395
        %v2991 = vsel %vm2987, %v2944, %v2397
        %v2993 = vsel %vm2987, %v2947, %v2399
        %v2995 = vsel %vm2987, %v2950, %v2401
        %v2997 = vsel %vm2987, %v2953, %v2403
        %v2999 = vsel %vm2987, %v2956, %v2405
        %v3001 = vsel %vm2987, %v2959, %v2407
        %v3003 = vsel %vm2987, %v2962, %v2409
        %v3005 = vsel %vm2987, %v2965, %v2411
        %v3007 = vsel %vm2987, %v2968, %v2413
        %v3009 = vsel %vm2987, %v2971, %v2415
        %v3011 = vsel %vm2987, %v2974, %v2417
        %v3013 = vsel %vm2987, %v2977, %v2419
        %v3015 = vsel %vm2987, %v2980, %v2421
        %v3017 = vsel %vm2987, %v2983, %v2423
        %v3019 = vsel %vm2987, %v2986, %v2425
        %vm3020 = vcmask 97280
        %v3022 = vsel %vm3020, %v2989, %v2491
        %v3024 = vsel %vm3020, %v2991, %v2493
        %v3026 = vsel %vm3020, %v2993, %v2495
        %v3028 = vsel %vm3020, %v2995, %v2497
        %v3030 = vsel %vm3020, %v2997, %v2499
        %v3032 = vsel %vm3020, %v2999, %v2501
        %v3034 = vsel %vm3020, %v3001, %v2503
        %v3036 = vsel %vm3020, %v3003, %v2505
        %v3038 = vsel %vm3020, %v3005, %v2507
        %v3040 = vsel %vm3020, %v3007, %v2509
        %v3042 = vsel %vm3020, %v3009, %v2511
        %v3044 = vsel %vm3020, %v3011, %v2513
        %v3046 = vsel %vm3020, %v3013, %v2515
        %v3048 = vsel %vm3020, %v3015, %v2517
        %v3050 = vsel %vm3020, %v3017, %v2519
        %v3052 = vsel %vm3020, %v3019, %v2521
        %vm3053 = vcmask 130048
        %v3055 = vsel %vm3053, %v3022, %v2571
        %v3057 = vsel %vm3053, %v3024, %v2573
        %v3059 = vsel %vm3053, %v3026, %v2575
        %v3061 = vsel %vm3053, %v3028, %v2577
        %v3063 = vsel %vm3053, %v3030, %v2579
        %v3065 = vsel %vm3053, %v3032, %v2581
        %v3067 = vsel %vm3053, %v3034, %v2583
        %v3069 = vsel %vm3053, %v3036, %v2585
        %v3071 = vsel %vm3053, %v3038, %v2587
        %v3073 = vsel %vm3053, %v3040, %v2589
        %v3075 = vsel %vm3053, %v3042, %v2591
        %v3077 = vsel %vm3053, %v3044, %v2593
        %v3079 = vsel %vm3053, %v3046, %v2595
        %v3081 = vsel %vm3053, %v3048, %v2597
        %v3083 = vsel %vm3053, %v3050, %v2599
        %v3085 = vsel %vm3053, %v3052, %v2601
        %vm3086 = vcmask 162816
        %v3088 = vsel %vm3086, %v3055, %v2651
        %v3090 = vsel %vm3086, %v3057, %v2653
        %v3092 = vsel %vm3086, %v3059, %v2655
        %v3094 = vsel %vm3086, %v3061, %v2657
        %v3096 = vsel %vm3086, %v3063, %v2659
        %v3098 = vsel %vm3086, %v3065, %v2661
        %v3100 = vsel %vm3086, %v3067, %v2663
        %v3102 = vsel %vm3086, %v3069, %v2665
        %v3104 = vsel %vm3086, %v3071, %v2667
        %v3106 = vsel %vm3086, %v3073, %v2669
        %v3108 = vsel %vm3086, %v3075, %v2671
        %v3110 = vsel %vm3086, %v3077, %v2673
        %v3112 = vsel %vm3086, %v3079, %v2675
        %v3114 = vsel %vm3086, %v3081, %v2677
        %v3116 = vsel %vm3086, %v3083, %v2679
        %v3118 = vsel %vm3086, %v3085, %v2681
        %vm3119 = vcmask 195584
        %v3121 = vsel %vm3119, %v3088, %v2747
        %v3123 = vsel %vm3119, %v3090, %v2749
        %v3125 = vsel %vm3119, %v3092, %v2751
        %v3127 = vsel %vm3119, %v3094, %v2753
        %v3129 = vsel %vm3119, %v3096, %v2755
        %v3131 = vsel %vm3119, %v3098, %v2757
        %v3133 = vsel %vm3119, %v3100, %v2759
        %v3135 = vsel %vm3119, %v3102, %v2761
        %v3137 = vsel %vm3119, %v3104, %v2763
        %v3139 = vsel %vm3119, %v3106, %v2765
        %v3141 = vsel %vm3119, %v3108, %v2767
        %v3143 = vsel %vm3119, %v3110, %v2769
        %v3145 = vsel %vm3119, %v3112, %v2771
        %v3147 = vsel %vm3119, %v3114, %v2773
        %v3149 = vsel %vm3119, %v3116, %v2775
        %v3151 = vsel %vm3119, %v3118, %v2777
        %vm3152 = vcmask 228352
        %v3154 = vsel %vm3152, %v3121, %v2827
        %v3156 = vsel %vm3152, %v3123, %v2829
        %v3158 = vsel %vm3152, %v3125, %v2831
        %v3160 = vsel %vm3152, %v3127, %v2833
        %v3162 = vsel %vm3152, %v3129, %v2835
        %v3164 = vsel %vm3152, %v3131, %v2837
        %v3166 = vsel %vm3152, %v3133, %v2839
        %v3168 = vsel %vm3152, %v3135, %v2841
        %v3170 = vsel %vm3152, %v3137, %v2843
        %v3172 = vsel %vm3152, %v3139, %v2845
        %v3174 = vsel %vm3152, %v3141, %v2847
        %v3176 = vsel %vm3152, %v3143, %v2849
        %v3178 = vsel %vm3152, %v3145, %v2851
        %v3180 = vsel %vm3152, %v3147, %v2853
        %v3182 = vsel %vm3152, %v3149, %v2855
        %v3184 = vsel %vm3152, %v3151, %v2857
        %vm3185 = vcmask 261120
        %v3187 = vsel %vm3185, %v3154, %v2907
        %v3189 = vsel %vm3185, %v3156, %v2909
        %v3191 = vsel %vm3185, %v3158, %v2911
        %v3193 = vsel %vm3185, %v3160, %v2913
        %v3195 = vsel %vm3185, %v3162, %v2915
        %v3197 = vsel %vm3185, %v3164, %v2917
        %v3199 = vsel %vm3185, %v3166, %v2919
        %v3201 = vsel %vm3185, %v3168, %v2921
        %v3203 = vsel %vm3185, %v3170, %v2923
        %v3205 = vsel %vm3185, %v3172, %v2925
        %v3207 = vsel %vm3185, %v3174, %v2927
        %v3209 = vsel %vm3185, %v3176, %v2929
        %v3211 = vsel %vm3185, %v3178, %v2931
        %v3213 = vsel %vm3185, %v3180, %v2933
        %v3215 = vsel %vm3185, %v3182, %v2935
        %v3217 = vsel %vm3185, %v3184, %v2937
        %v3218 = vld [vmem:[#allocation2] sm:$0xf]
        %v3219 = vld [vmem:[#allocation2 + $0x4] sm:$0xf]
        %v3220 = vld [vmem:[#allocation2 + $0x8] sm:$0xf]
        %v3221 = vld [vmem:[#allocation2 + $0xc] sm:$0xf]
        %v3222 = vld [vmem:[#allocation2 + $0x10] sm:$0x3]
        %v3223 = vld [vmem:[%s3] sm:$0x1f]
        %v3224 = vstv %s239
        %v3225 = vmul.f32 %v3224, %v3223
        %v3227 = vrot.slane %v3225, 1
        %v3229 = vadd.f32 %v3223, %v3227
        %v3230 = vstv %s241
        %v3231 = vmul.f32 %v3230, %v3223
        %v3233 = vrot.slane %v3231, 2
        %v3235 = vadd.f32 %v3229, %v3233
        %v3236 = vstv %s243
        %v3237 = vmul.f32 %v3236, %v3223
        %v3239 = vrot.slane %v3237, 3
        %v3241 = vadd.f32 %v3235, %v3239
        %v3242 = vstv %s245
        %v3243 = vmul.f32 %v3242, %v3223
        %v3245 = vrot.slane %v3243, 4
        %v3247 = vadd.f32 %v3241, %v3245
        %v3248 = vperm.slane %v3247, 0
        %v3254 = vunpack.c.l.b16 %v3218
        %v3255 = vunpack.c.l.b16 %v3219
        %v3256 = vunpack.c.l.b16 %v3220
        %v3257 = vunpack.c.l.b16 %v3221
        %v3258 = vunpack.c.l.b16 %v3222
        %v3259 = vpack.c.b16 %v3255, %v3254
        %v3260 = vpack.c.b16 %v3257, %v3256
        %v3261 = vpack.c.b16 %v3258, %v3258
        %vm3264 = vcmask 293888
        %v3265 = vsel %vm3264, %v3187, 0
        %v3267 = vsel %vm3264, %v3189, 0
        %v3269 = vsel %vm3264, %v3191, 0
        %v3271 = vsel %vm3264, %v3193, 0
        %v3273 = vsel %vm3264, %v3195, 0
        %v3275 = vsel %vm3264, %v3197, 0
        %v3277 = vsel %vm3264, %v3199, 0
        %v3279 = vsel %vm3264, %v3201, 0
        %v3281 = vsel %vm3264, %v3203, 0
        %v3283 = vsel %vm3264, %v3205, 0
        %v3285 = vsel %vm3264, %v3207, 0
        %v3287 = vsel %vm3264, %v3209, 0
        %v3289 = vsel %vm3264, %v3211, 0
        %v3291 = vsel %vm3264, %v3213, 0
        %v3293 = vsel %vm3264, %v3215, 0
        %v3295 = vsel %vm3264, %v3217, 0
        %vm3297 = vcmask 1041408
        %v3299 = vsel %vm3297, %v3261, 0
        %3301 = vmatpush.bf16.msra.mxu0 0
        %3302 = vmatpush.bf16.msra.mxu0 0
        %3303 = vmatpush.bf16.msra.mxu0 0
        %3304 = vmatpush.bf16.msra.mxu0 0
        %3305 = vmatpush.bf16.msra.mxu0 0
        %3306 = vmatpush.bf16.msra.mxu0 %v3299
        %3307 = vmatpush.bf16.msra.mxu0 %v3260
        %3308 = vmatpush.bf16.msra.mxu0 %v3259
        %3309 = vmatmul.bf16.gmra.mxu0 %v3265
        %v3310 = vpop.f32.mrf.mxu0
        %v3311 = vadd.f32 %v3248, %v3310
        %v3312 = vpop.f32.mrf.mxu0
        %v3313 = vadd.f32 %v3248, %v3312
        %3314 = vmatmul.bf16.gmra.mxu0 %v3267
        %v3315 = vpop.f32.mrf.mxu0
        %v3316 = vadd.f32 %v3248, %v3315
        %v3317 = vpop.f32.mrf.mxu0
        %v3318 = vadd.f32 %v3248, %v3317
        %3319 = vmatmul.bf16.gmra.mxu0 %v3269
        %v3320 = vpop.f32.mrf.mxu0
        %v3321 = vadd.f32 %v3248, %v3320
        %v3322 = vpop.f32.mrf.mxu0
        %v3323 = vadd.f32 %v3248, %v3322
        %3324 = vmatmul.bf16.gmra.mxu0 %v3271
        %v3325 = vpop.f32.mrf.mxu0
        %v3326 = vadd.f32 %v3248, %v3325
        %v3327 = vpop.f32.mrf.mxu0
        %v3328 = vadd.f32 %v3248, %v3327
        %3329 = vmatmul.bf16.gmra.mxu0 %v3273
        %v3330 = vpop.f32.mrf.mxu0
        %v3331 = vadd.f32 %v3248, %v3330
        %v3332 = vpop.f32.mrf.mxu0
        %v3333 = vadd.f32 %v3248, %v3332
        %3334 = vmatmul.bf16.gmra.mxu0 %v3275
        %v3335 = vpop.f32.mrf.mxu0
        %v3336 = vadd.f32 %v3248, %v3335
        %v3337 = vpop.f32.mrf.mxu0
        %v3338 = vadd.f32 %v3248, %v3337
        %3339 = vmatmul.bf16.gmra.mxu0 %v3277
        %v3340 = vpop.f32.mrf.mxu0
        %v3341 = vadd.f32 %v3248, %v3340
        %v3342 = vpop.f32.mrf.mxu0
        %v3343 = vadd.f32 %v3248, %v3342
        %3344 = vmatmul.bf16.gmra.mxu0 %v3279
        %v3345 = vpop.f32.mrf.mxu0
        %v3346 = vadd.f32 %v3248, %v3345
        %v3347 = vpop.f32.mrf.mxu0
        %v3348 = vadd.f32 %v3248, %v3347
        %3349 = vmatmul.bf16.gmra.mxu0 %v3281
        %v3350 = vpop.f32.mrf.mxu0
        %v3351 = vadd.f32 %v3248, %v3350
        %v3352 = vpop.f32.mrf.mxu0
        %v3353 = vadd.f32 %v3248, %v3352
        %3354 = vmatmul.bf16.gmra.mxu0 %v3283
        %v3355 = vpop.f32.mrf.mxu0
        %v3356 = vadd.f32 %v3248, %v3355
        %v3357 = vpop.f32.mrf.mxu0
        %v3358 = vadd.f32 %v3248, %v3357
        %3359 = vmatmul.bf16.gmra.mxu0 %v3285
        %v3360 = vpop.f32.mrf.mxu0
        %v3361 = vadd.f32 %v3248, %v3360
        %v3362 = vpop.f32.mrf.mxu0
        %v3363 = vadd.f32 %v3248, %v3362
        %3364 = vmatmul.bf16.gmra.mxu0 %v3287
        %v3365 = vpop.f32.mrf.mxu0
        %v3366 = vadd.f32 %v3248, %v3365
        %v3367 = vpop.f32.mrf.mxu0
        %v3368 = vadd.f32 %v3248, %v3367
        %3369 = vmatmul.bf16.gmra.mxu0 %v3289
        %v3370 = vpop.f32.mrf.mxu0
        %v3371 = vadd.f32 %v3248, %v3370
        %v3372 = vpop.f32.mrf.mxu0
        %v3373 = vadd.f32 %v3248, %v3372
        %3374 = vmatmul.bf16.gmra.mxu0 %v3291
        %v3375 = vpop.f32.mrf.mxu0
        %v3376 = vadd.f32 %v3248, %v3375
        %v3377 = vpop.f32.mrf.mxu0
        %v3378 = vadd.f32 %v3248, %v3377
        %3379 = vmatmul.bf16.gmra.mxu0 %v3293
        %v3380 = vpop.f32.mrf.mxu0
        %v3381 = vadd.f32 %v3248, %v3380
        %v3382 = vpop.f32.mrf.mxu0
        %v3383 = vadd.f32 %v3248, %v3382
        %3384 = vmatmul.bf16.gmra.mxu0 %v3295
        %v3385 = vpop.f32.mrf.mxu0
        %v3386 = vadd.f32 %v3248, %v3385
        %v3387 = vpop.f32.mrf.mxu0
        %v3388 = vadd.f32 %v3248, %v3387
        %3389 = vdwg.mxu0
        %3390 = vst.msk [vmem:[%s235] sm:$0xff] %vm2987, %v3311
        %3391 = vst.msk [vmem:[%s235 + $0x8] sm:$0xff] %vm2987, %v3313
        %3392 = vst.msk [vmem:[%s235 + $0x10] sm:$0xff] %vm2987, %v3316
        %3393 = vst.msk [vmem:[%s235 + $0x18] sm:$0xff] %vm2987, %v3318
        %3394 = vst.msk [vmem:[%s235 + $0x20] sm:$0xff] %vm2987, %v3321
        %3395 = vst.msk [vmem:[%s235 + $0x28] sm:$0xff] %vm2987, %v3323
        %3396 = vst.msk [vmem:[%s235 + $0x30] sm:$0xff] %vm2987, %v3326
        %3397 = vst.msk [vmem:[%s235 + $0x38] sm:$0xff] %vm2987, %v3328
        %3398 = vst.msk [vmem:[%s235 + $0x40] sm:$0xff] %vm2987, %v3331
        %3399 = vst.msk [vmem:[%s235 + $0x48] sm:$0xff] %vm2987, %v3333
        %3400 = vst.msk [vmem:[%s235 + $0x50] sm:$0xff] %vm2987, %v3336
        %3401 = vst.msk [vmem:[%s235 + $0x58] sm:$0xff] %vm2987, %v3338
        %3402 = vst.msk [vmem:[%s235 + $0x60] sm:$0xff] %vm2987, %v3341
        %3403 = vst.msk [vmem:[%s235 + $0x68] sm:$0xff] %vm2987, %v3343
        %3404 = vst.msk [vmem:[%s235 + $0x70] sm:$0xff] %vm2987, %v3346
        %3405 = vst.msk [vmem:[%s235 + $0x78] sm:$0xff] %vm2987, %v3348
        %3406 = vst.msk [vmem:[%s235 + $0x80] sm:$0xff] %vm2987, %v3351
        %3407 = vst.msk [vmem:[%s235 + $0x88] sm:$0xff] %vm2987, %v3353
        %3408 = vst.msk [vmem:[%s235 + $0x90] sm:$0xff] %vm2987, %v3356
        %3409 = vst.msk [vmem:[%s235 + $0x98] sm:$0xff] %vm2987, %v3358
        %3410 = vst.msk [vmem:[%s235 + $0xa0] sm:$0xff] %vm2987, %v3361
        %3411 = vst.msk [vmem:[%s235 + $0xa8] sm:$0xff] %vm2987, %v3363
        %3412 = vst.msk [vmem:[%s235 + $0xb0] sm:$0xff] %vm2987, %v3366
        %3413 = vst.msk [vmem:[%s235 + $0xb8] sm:$0xff] %vm2987, %v3368
        %3414 = vst.msk [vmem:[%s235 + $0xc0] sm:$0xff] %vm2987, %v3371
        %3415 = vst.msk [vmem:[%s235 + $0xc8] sm:$0xff] %vm2987, %v3373
        %3416 = vst.msk [vmem:[%s235 + $0xd0] sm:$0xff] %vm2987, %v3376
        %3417 = vst.msk [vmem:[%s235 + $0xd8] sm:$0xff] %vm2987, %v3378
        %3418 = vst.msk [vmem:[%s235 + $0xe0] sm:$0xff] %vm2987, %v3381
        %3419 = vst.msk [vmem:[%s235 + $0xe8] sm:$0xff] %vm2987, %v3383
        %3420 = vst.msk [vmem:[%s235 + $0xf0] sm:$0xff] %vm2987, %v3386
        %3421 = vst.msk [vmem:[%s235 + $0xf8] sm:$0xff] %vm2987, %v3388
        %s3422 = smul.u32 16, %s21
        %p3423 = scmp.lt.s32.totalorder %s20, 1
        %s3424 = scalar_select %p3423, %s20, 1
        %p3425 = scmp.lt.s32.totalorder %s3422, 15
        %s3426 = scalar_select %p3425, %s3422, 15
        %s3427 = smul.addr %s3426, 2
        %s3428 = smul.addr %s3424, 32
        %s3429 = sadd.s32 %s3427, %s3428
        %s3430 = smul.addr %s3429, 8
        %s3431 = scalar_lea.vmem %s4, %s3430
        // Predicated region
        $region45: #{conv2d_dynamic_forward.1} parent=35 // pred_check
          %p3432 = pneg %p137
        $region46: #{conv2d_dynamic_forward.1} parent=35 // pred_check_branch
          %3434 = sbr.rel (%p3432) target = $region48
        $region47: #{conv2d_dynamic_forward.1} parent=35 // pred_region
          %s3435 = smul.u32 16, %s21
        $region48: #{conv2d_dynamic_forward.1} parent=35 // pred_fallthru
          _
      $region36: #{conv2d_dynamic_forward.1} parent=5 // pred_fallthru
        _
      %p3436 = scmp.le.s32.totalorder 2, %s11
      // Predicated region
      $region49: #{conv2d_dynamic_forward.1} parent=5 // pred_check
        %p3437 = pneg %p3436
      $region50: #{conv2d_dynamic_forward.1} parent=5 // pred_check_branch
        %3439 = sbr.rel (%p3437) target = $region52
      $region51: #{conv2d_dynamic_forward.1} parent=5 // pred_region
        %s3440 = ssub.s32 %s11, 2
        // Predicated region
        $region53: #{conv2d_dynamic_forward.1} parent=51 // pred_check
          %p3441 = pneg %p143
        $region54: #{conv2d_dynamic_forward.1} parent=51 // pred_check_branch
          %3443 = sbr.rel (%p3441) target = $region56
        $region55: #{conv2d_dynamic_forward.1} parent=51 // pred_region
          %s3444 = smul.u32 16, %s23
          %p3445 = scmp.lt.s32.totalorder %s22, 1
          %s3446 = scalar_select %p3445, %s22, 1
          %p3447 = scmp.lt.s32.totalorder %s3444, 15
          %s3448 = scalar_select %p3447, %s3444, 15
          %s3449 = smul.addr %s3448, 2
          %s3450 = smul.addr %s3446, 32
          %s3451 = sadd.s32 %s3449, %s3450
          %s3452 = smul.addr %s3451, 8
          %s3453 = scalar_lea.vmem %s4, %s3452
        $region56: #{conv2d_dynamic_forward.1} parent=51 // pred_fallthru
          _
      $region52: #{conv2d_dynamic_forward.1} parent=5 // pred_fallthru
        _
    $region6: #{conv2d_dynamic_forward.1} parent=1 // loop_footer
      %s15 = sadd.s32 1, %s11
    $region7: #{conv2d_dynamic_forward.1} parent=1 // loop_footer_branch
      %10 = sbr.rel target = $region3
    $region8: #{conv2d_dynamic_forward.1} parent=1 // loop_exit
      _
    %3454 = vsyncpa [#allocation4], 1
    %s3455 = scalar_lea.sflag [#allocation4], 1
    %3456 = vsyncpa %s3455, 1

</llo_original>
